<compile_context>
chip_gen: v7x
topology: tpu7x:2x2x1
jax: 0.10.0
libtpu: 0.0.40
codegen_flags: <defaults>
</compile_context>

<pallas_src>
import jax
import jax.numpy as jnp
from jax import lax
from jax.experimental import pallas as pl
from jax.experimental.pallas import tpu as pltpu

# ---- small synthetic DistilBERT-style config -------------------------------
VOCAB = 64
MAX_POS = 16
D_MODEL = 32          # transformer model dim
N_HEADS = 4
HEAD_DIM = D_MODEL // N_HEADS
FFN_DIM = 64
N_LAYERS = 2
NUM_LABELS = 32       # == hparams['hidden_dim'] (DistilBertForSequenceClassification num_labels)
LN_EPS = 1e-12
NEG_INF = -1e30


# ---- math helpers usable both inside kernels and in the JAX reference ------
def _gelu(x):
    # TODO(synk): DistilBERT uses exact erf-GELU; tanh approximation used here
    # because it lowers cleanly to the TPU EUP (reference uses the same approx).
    c = 0.7978845608028654  # sqrt(2/pi)
    return 0.5 * x * (1.0 + jnp.tanh(c * (x + 0.044715 * x * x * x)))


def _layernorm(x, g, b):
    mu = jnp.mean(x, axis=-1, keepdims=True)
    var = jnp.mean((x - mu) ** 2, axis=-1, keepdims=True)
    return (x - mu) * lax.rsqrt(var + LN_EPS) * g + b


# ---- single fused Pallas kernel ---------------------------------------------
def make_fused_kernel(B, S, n_layers):
    BS = B * S

    def kernel(*refs):
        o_ref = refs[-1]
        (onehot_ref, emb_tab_ref, emb_g_ref, emb_b_ref, bias_ref, sel_ref) = refs[:6]

        # Embedding lookup (word + positional) as one exact one-hot matmul,
        # followed by the embedding LayerNorm.
        x = jnp.dot(onehot_ref[...], emb_tab_ref[...],
                    preferred_element_type=jnp.float32)            # (BS, D)
        x = _layernorm(x, emb_g_ref[...], emb_b_ref[...])

        att_bias = bias_ref[...]                                   # (H*BS, H*BS)

        idx = 6
        for _ in range(n_layers):                                  # static unroll
            (wqkv_r, bqkv_r, wo_r, bo_r, ln1g_r, ln1b_r,
             w1_r, b1_r, w2_r, b2_r, ln2g_r, ln2b_r) = refs[idx:idx + 12]
            idx += 12

            # Fused QKV projection: (BS, 3D).  1/sqrt(HEAD_DIM) scale is already
            # folded into the Q columns of wqkv/bqkv by the wrapper.
            qkv = jnp.dot(x, wqkv_r[...],
                          preferred_element_type=jnp.float32) + bqkv_r[...]

            # Pack heads along the sublane axis -> (N_HEADS*BS, HEAD_DIM)
            def pack(base, _qkv=qkv):
                return jnp.concatenate(
                    [_qkv[:, base + h * HEAD_DIM: base + (h + 1) * HEAD_DIM]
                     for h in range(N_HEADS)], axis=0)

            qp = pack(0)
            kp = pack(D_MODEL)
            vp = pack(2 * D_MODEL)

            # One QK^T and one PV matmul per layer (all heads, all batches).
            s = lax.dot_general(qp, kp, (((1,), (1,)), ((), ())),
                                preferred_element_type=jnp.float32) + att_bias
            s = s - jnp.max(s, axis=-1, keepdims=True)
            p = jnp.exp(s)
            # NOTE: an all-masked row would give denom==0 (same latent NaN as the
            # PyTorch / reference path); not reachable with the provided masks.
            p = p * pl.reciprocal(jnp.sum(p, axis=-1, keepdims=True), approx=True)
            ctxp = jnp.dot(p, vp, preferred_element_type=jnp.float32)  # (H*BS, HD)

            # Unpack heads back to (BS, D)
            ctx = jnp.concatenate(
                [ctxp[h * BS:(h + 1) * BS, :] for h in range(N_HEADS)], axis=1)

            attn_out = jnp.dot(ctx, wo_r[...],
                               preferred_element_type=jnp.float32) + bo_r[...]
            x1 = _layernorm(x + attn_out, ln1g_r[...], ln1b_r[...])

            hdn = _gelu(jnp.dot(x1, w1_r[...],
                                preferred_element_type=jnp.float32) + b1_r[...])
            ffn = jnp.dot(hdn, w2_r[...],
                          preferred_element_type=jnp.float32) + b2_r[...]
            x = _layernorm(x1 + ffn, ln2g_r[...], ln2b_r[...])

        # Classification head on the [CLS] tokens (rows b*S), selected via a tiny
        # matmul to avoid strided sublane slicing.  The DistilBERT classifier and
        # the fused linear_out|linear_aux_out heads are pre-multiplied into a
        # single (D, 2) weight by the wrapper (dropout is identity at inference).
        (wpre_r, bpre_r, whead_r, bhead_r) = refs[idx:idx + 4]
        cls = jnp.dot(sel_ref[...], x, preferred_element_type=jnp.float32)   # (B, D)
        h = jnp.maximum(jnp.dot(cls, wpre_r[...],
                                preferred_element_type=jnp.float32) + bpre_r[...], 0.0)
        o_ref[...] = jnp.dot(h, whead_r[...],
                             preferred_element_type=jnp.float32) + bhead_r[...]  # (B, 2)

    return kernel


# ---- wrapper ----------------------------------------------------------------
@jax.jit
def bert_pallas_forward(params, input_ids, attention_mask):
    B, S = input_ids.shape
    BS = B * S
    scale = 1.0 / (HEAD_DIM ** 0.5)

    # --- one-time XLA-side preparation (glue): one-hot ids, fused weights, bias ---
    onehot_tok = jax.nn.one_hot(input_ids.reshape(-1), VOCAB, dtype=jnp.float32)
    pos_ids = jnp.tile(jnp.arange(S, dtype=jnp.int32), (B,))
    onehot_pos = jax.nn.one_hot(pos_ids, MAX_POS, dtype=jnp.float32)
    onehot = jnp.concatenate([onehot_tok, onehot_pos], axis=1)       # (BS, VOCAB+MAX_POS)
    emb_table = jnp.concatenate([params['word_emb'], params['pos_emb']], axis=0)

    # Block-diagonal attention bias over (head, batch) blocks with key-padding mask.
    m = attention_mask.astype(jnp.float32).reshape(BS)
    inblock = jnp.kron(jnp.eye(N_HEADS * B, dtype=jnp.float32),
                       jnp.ones((S, S), jnp.float32))                # (H*BS, H*BS)
    allow = inblock * jnp.tile(m, (N_HEADS,))[None, :]
    att_bias = jnp.where(allow > 0.5, 0.0, NEG_INF).astype(jnp.float32)

    # [CLS] row selector: picks rows b*S out of the (BS, D) activation slab.
    sel = jax.nn.one_hot(jnp.arange(B) * S, BS, dtype=jnp.float32)   # (B, BS)

    args = [onehot, emb_table, params['emb_ln_g'], params['emb_ln_b'], att_bias, sel]
    for lp in params['layers']:
        # Fold the attention scale into Q, then fuse Q/K/V into one projection.
        wqkv = jnp.concatenate([lp['wq'] * scale, lp['wk'], lp['wv']], axis=1)   # (D, 3D)
        bqkv = jnp.concatenate([lp['bq'] * scale, lp['bk'], lp['bv']], axis=1)   # (1, 3D)
        args += [wqkv, bqkv, lp['wo'], lp['bo'], lp['ln1_g'], lp['ln1_b'],
                 lp['w1'], lp['b1'], lp['w2'], lp['b2'], lp['ln2_g'], lp['ln2_b']]

    # Fuse classifier (D, NUM_LABELS) with the two 1-unit heads -> single (D, 2).
    w_head = jnp.concatenate([params['w_out'], params['w_aux']], axis=1)  # (NUM_LABELS, 2)
    b_head = jnp.concatenate([params['b_out'], params['b_aux']], axis=1)  # (1, 2)
    w_head_fused = params['w_cls'] @ w_head                               # (D, 2)
    b_head_fused = params['b_cls'] @ w_head + b_head                      # (1, 2)
    args += [params['w_pre'], params['b_pre'], w_head_fused, b_head_fused]

    vmem = pl.BlockSpec(memory_space=pltpu.MemorySpace.VMEM)
    kernel = make_fused_kernel(B, S, len(params['layers']))
    return pl.pallas_call(
        kernel,
        in_specs=[vmem] * len(args),
        out_specs=vmem,
        out_shape=jax.ShapeDtypeStruct((B, 2), jnp.float32),
    )(*args)


# ---- pure-JAX reference (same math, unfused / per-head) ----------------------
def reference_forward(params, input_ids, attention_mask):
    B, S = input_ids.shape
    x = params['word_emb'][input_ids] + params['pos_emb'][:S][None, :, :]
    x = _layernorm(x, params['emb_ln_g'], params['emb_ln_b'])
    bias = jnp.where(attention_mask.astype(jnp.float32) > 0.5, 0.0, NEG_INF)[:, None, :]
    for lp in params['layers']:
        q = (x @ lp['wq'] + lp['bq']) * (1.0 / (HEAD_DIM ** 0.5))
        k = x @ lp['wk'] + lp['bk']
        v = x @ lp['wv'] + lp['bv']
        heads = []
        for h in range(N_HEADS):
            lo = h * HEAD_DIM
            qh, kh, vh = q[..., lo:lo + HEAD_DIM], k[..., lo:lo + HEAD_DIM], v[..., lo:lo + HEAD_DIM]
            s = jnp.einsum('bqd,bkd->bqk', qh, kh) + bias
            s = s - jnp.max(s, axis=-1, keepdims=True)
            p = jnp.exp(s)
            p = p / jnp.sum(p, axis=-1, keepdims=True)
            heads.append(jnp.einsum('bqk,bkd->bqd', p, vh))
        ctx = jnp.concatenate(heads, axis=-1)
        attn_out = ctx @ lp['wo'] + lp['bo']
        x1 = _layernorm(x + attn_out, lp['ln1_g'], lp['ln1_b'])
        ffn = _gelu(x1 @ lp['w1'] + lp['b1']) @ lp['w2'] + lp['b2']
        x = _layernorm(x1 + ffn, lp['ln2_g'], lp['ln2_b'])
    cls = x[:, 0, :]
    h = jnp.maximum(cls @ params['w_pre'] + params['b_pre'], 0.0)
    logits = h @ params['w_cls'] + params['b_cls']
    res = logits @ params['w_out'] + params['b_out']
    aux = logits @ params['w_aux'] + params['b_aux']
    return jnp.concatenate([res, aux], axis=1)


# ---- deterministic parameter init --------------------------------------------
def init_params(key):
    keys = iter(jax.random.split(key, 128))

    def nrm(shape, scale=0.02):
        return scale * jax.random.normal(next(keys), shape, dtype=jnp.float32)

    p = {
        'word_emb': nrm((VOCAB, D_MODEL)),
        'pos_emb': nrm((MAX_POS, D_MODEL)),
        'emb_ln_g': jnp.ones((1, D_MODEL), jnp.float32),
        'emb_ln_b': jnp.zeros((1, D_MODEL), jnp.float32),
        'layers': [],
        'w_pre': nrm((D_MODEL, D_MODEL)), 'b_pre': nrm((1, D_MODEL)),
        'w_cls': nrm((D_MODEL, NUM_LABELS)), 'b_cls': nrm((1, NUM_LABELS)),
        'w_out': nrm((NUM_LABELS, 1)), 'b_out': nrm((1, 1)),
        'w_aux': nrm((NUM_LABELS, 1)), 'b_aux': nrm((1, 1)),
    }
    for _ in range(N_LAYERS):
        p['layers'].append({
            'wq': nrm((D_MODEL, D_MODEL)), 'bq': nrm((1, D_MODEL)),
            'wk': nrm((D_MODEL, D_MODEL)), 'bk': nrm((1, D_MODEL)),
            'wv': nrm((D_MODEL, D_MODEL)), 'bv': nrm((1, D_MODEL)),
            'wo': nrm((D_MODEL, D_MODEL)), 'bo': nrm((1, D_MODEL)),
            'ln1_g': jnp.ones((1, D_MODEL), jnp.float32),
            'ln1_b': jnp.zeros((1, D_MODEL), jnp.float32),
            'w1': nrm((D_MODEL, FFN_DIM)), 'b1': nrm((1, FFN_DIM)),
            'w2': nrm((FFN_DIM, D_MODEL)), 'b2': nrm((1, D_MODEL)),
            'ln2_g': jnp.ones((1, D_MODEL), jnp.float32),
            'ln2_b': jnp.zeros((1, D_MODEL), jnp.float32),
        })
    return p


if __name__ == "__main__":
    key = jax.random.PRNGKey(0)
    pkey, ikey = jax.random.split(key)
    params = init_params(pkey)

    B, S = 2, 8
    input_ids = jax.random.randint(ikey, (B, S), 0, VOCAB, dtype=jnp.int32)
    attention_mask = jnp.array([[1, 1, 1, 1, 1, 1, 1, 1],
                                [1, 1, 1, 1, 1, 1, 0, 0]], dtype=jnp.int32)

    out = bert_pallas_forward(params, input_ids, attention_mask)
    out = jax.block_until_ready(out)

    ref = reference_forward(params, input_ids, attention_mask)
    assert out.shape == (B, 2), out.shape
    max_err = float(jnp.max(jnp.abs(out - ref)))
    assert max_err < 1e-3, f"mismatch vs reference: {max_err}"
    print("KERNEL_OK")
</pallas_src>

<mosaic_0001>
module attributes {stable_mosaic.version = 11 : i64} {
  func.func @kernel(%arg0: memref<16x80xf32, #tpu.memory_space<vmem>>, %arg1: memref<80x32xf32, #tpu.memory_space<vmem>>, %arg2: memref<1x32xf32, #tpu.memory_space<vmem>>, %arg3: memref<1x32xf32, #tpu.memory_space<vmem>>, %arg4: memref<64x64xf32, #tpu.memory_space<vmem>>, %arg5: memref<2x16xf32, #tpu.memory_space<vmem>>, %arg6: memref<32x96xf32, #tpu.memory_space<vmem>>, %arg7: memref<1x96xf32, #tpu.memory_space<vmem>>, %arg8: memref<32x32xf32, #tpu.memory_space<vmem>>, %arg9: memref<1x32xf32, #tpu.memory_space<vmem>>, %arg10: memref<1x32xf32, #tpu.memory_space<vmem>>, %arg11: memref<1x32xf32, #tpu.memory_space<vmem>>, %arg12: memref<32x64xf32, #tpu.memory_space<vmem>>, %arg13: memref<1x64xf32, #tpu.memory_space<vmem>>, %arg14: memref<64x32xf32, #tpu.memory_space<vmem>>, %arg15: memref<1x32xf32, #tpu.memory_space<vmem>>, %arg16: memref<1x32xf32, #tpu.memory_space<vmem>>, %arg17: memref<1x32xf32, #tpu.memory_space<vmem>>, %arg18: memref<32x96xf32, #tpu.memory_space<vmem>>, %arg19: memref<1x96xf32, #tpu.memory_space<vmem>>, %arg20: memref<32x32xf32, #tpu.memory_space<vmem>>, %arg21: memref<1x32xf32, #tpu.memory_space<vmem>>, %arg22: memref<1x32xf32, #tpu.memory_space<vmem>>, %arg23: memref<1x32xf32, #tpu.memory_space<vmem>>, %arg24: memref<32x64xf32, #tpu.memory_space<vmem>>, %arg25: memref<1x64xf32, #tpu.memory_space<vmem>>, %arg26: memref<64x32xf32, #tpu.memory_space<vmem>>, %arg27: memref<1x32xf32, #tpu.memory_space<vmem>>, %arg28: memref<1x32xf32, #tpu.memory_space<vmem>>, %arg29: memref<1x32xf32, #tpu.memory_space<vmem>>, %arg30: memref<32x32xf32, #tpu.memory_space<vmem>>, %arg31: memref<1x32xf32, #tpu.memory_space<vmem>>, %arg32: memref<32x2xf32, #tpu.memory_space<vmem>>, %arg33: memref<1x2xf32, #tpu.memory_space<vmem>>, %arg34: memref<2x2xf32, #tpu.memory_space<vmem>>) attributes {dimension_semantics = [], scalar_prefetch = 0 : i64, scratch_operands = 0 : i64, tpu.core_type = #tpu.core_type<tc>} {
    %c0 = arith.constant 0 : index
    %c0_0 = arith.constant 0 : index
    %0 = vector.load %arg0[%c0, %c0_0] : memref<16x80xf32, #tpu.memory_space<vmem>>, vector<16x80xf32>
    %c0_1 = arith.constant 0 : index
    %c0_2 = arith.constant 0 : index
    %1 = vector.load %arg1[%c0_1, %c0_2] : memref<80x32xf32, #tpu.memory_space<vmem>>, vector<80x32xf32>
    %cst = arith.constant dense<0.000000e+00> : vector<16x32xf32>
    %2 = tpu.matmul %0, %1, %cst {dimension_numbers = #tpu.dot_dimension_numbers<[1], [0], [0], [1], [0, 0, 1, 1], [], []>} : vector<16x80xf32>, vector<80x32xf32>, vector<16x32xf32> -> vector<16x32xf32>
    %c0_3 = arith.constant 0 : index
    %c0_4 = arith.constant 0 : index
    %3 = vector.load %arg2[%c0_3, %c0_4] : memref<1x32xf32, #tpu.memory_space<vmem>>, vector<1x32xf32>
    %c0_5 = arith.constant 0 : index
    %c0_6 = arith.constant 0 : index
    %4 = vector.load %arg3[%c0_5, %c0_6] : memref<1x32xf32, #tpu.memory_space<vmem>>, vector<1x32xf32>
    %cst_7 = arith.constant dense<0.000000e+00> : vector<16xf32>
    %5 = vector.multi_reduction <add>, %2, %cst_7 [1] : vector<16x32xf32> to vector<16xf32>
    %6 = vector.shape_cast %5 : vector<16xf32> to vector<16x1xf32>
    %cst_8 = arith.constant 3.200000e+01 : f32
    %7 = vector.broadcast %cst_8 : f32 to vector<16x1xf32>
    %8 = arith.divf %6, %7 : vector<16x1xf32>
    %9 = vector.broadcast %8 : vector<16x1xf32> to vector<16x32xf32>
    %10 = arith.subf %2, %9 : vector<16x32xf32>
    %11 = arith.mulf %10, %10 : vector<16x32xf32>
    %cst_9 = arith.constant dense<0.000000e+00> : vector<16xf32>
    %12 = vector.multi_reduction <add>, %11, %cst_9 [1] : vector<16x32xf32> to vector<16xf32>
    %13 = vector.shape_cast %12 : vector<16xf32> to vector<16x1xf32>
    %cst_10 = arith.constant 3.200000e+01 : f32
    %14 = vector.broadcast %cst_10 : f32 to vector<16x1xf32>
    %15 = arith.divf %13, %14 : vector<16x1xf32>
    %16 = vector.broadcast %8 : vector<16x1xf32> to vector<16x32xf32>
    %17 = arith.subf %2, %16 : vector<16x32xf32>
    %cst_11 = arith.constant 9.99999996E-13 : f32
    %18 = vector.broadcast %cst_11 : f32 to vector<16x1xf32>
    %19 = arith.addf %15, %18 : vector<16x1xf32>
    %20 = math.rsqrt %19 : vector<16x1xf32>
    %21 = vector.broadcast %20 : vector<16x1xf32> to vector<16x32xf32>
    %22 = arith.mulf %17, %21 : vector<16x32xf32>
    %23 = vector.broadcast %3 : vector<1x32xf32> to vector<16x32xf32>
    %24 = arith.mulf %22, %23 : vector<16x32xf32>
    %25 = vector.broadcast %4 : vector<1x32xf32> to vector<16x32xf32>
    %26 = arith.addf %24, %25 : vector<16x32xf32>
    %c0_12 = arith.constant 0 : index
    %c0_13 = arith.constant 0 : index
    %27 = vector.load %arg4[%c0_12, %c0_13] : memref<64x64xf32, #tpu.memory_space<vmem>>, vector<64x64xf32>
    %c0_14 = arith.constant 0 : index
    %c0_15 = arith.constant 0 : index
    %28 = vector.load %arg6[%c0_14, %c0_15] : memref<32x96xf32, #tpu.memory_space<vmem>>, vector<32x96xf32>
    %cst_16 = arith.constant dense<0.000000e+00> : vector<16x96xf32>
    %29 = tpu.matmul %26, %28, %cst_16 {dimension_numbers = #tpu.dot_dimension_numbers<[1], [0], [0], [1], [0, 0, 1, 1], [], []>} : vector<16x32xf32>, vector<32x96xf32>, vector<16x96xf32> -> vector<16x96xf32>
    %c0_17 = arith.constant 0 : index
    %c0_18 = arith.constant 0 : index
    %30 = vector.load %arg7[%c0_17, %c0_18] : memref<1x96xf32, #tpu.memory_space<vmem>>, vector<1x96xf32>
    %31 = vector.broadcast %30 : vector<1x96xf32> to vector<16x96xf32>
    %32 = arith.addf %29, %31 : vector<16x96xf32>
    %33 = vector.extract_strided_slice %32 {offsets = [0, 0], sizes = [16, 8], strides = [1, 1]} : vector<16x96xf32> to vector<16x8xf32>
    %34 = vector.extract_strided_slice %32 {offsets = [0, 8], sizes = [16, 8], strides = [1, 1]} : vector<16x96xf32> to vector<16x8xf32>
    %35 = vector.extract_strided_slice %32 {offsets = [0, 16], sizes = [16, 8], strides = [1, 1]} : vector<16x96xf32> to vector<16x8xf32>
    %36 = vector.extract_strided_slice %32 {offsets = [0, 24], sizes = [16, 8], strides = [1, 1]} : vector<16x96xf32> to vector<16x8xf32>
    %37 = tpu.concatenate %33, %34, %35, %36 in 0 : vector<16x8xf32>, vector<16x8xf32>, vector<16x8xf32>, vector<16x8xf32> -> vector<64x8xf32>
    %38 = vector.extract_strided_slice %32 {offsets = [0, 32], sizes = [16, 8], strides = [1, 1]} : vector<16x96xf32> to vector<16x8xf32>
    %39 = vector.extract_strided_slice %32 {offsets = [0, 40], sizes = [16, 8], strides = [1, 1]} : vector<16x96xf32> to vector<16x8xf32>
    %40 = vector.extract_strided_slice %32 {offsets = [0, 48], sizes = [16, 8], strides = [1, 1]} : vector<16x96xf32> to vector<16x8xf32>
    %41 = vector.extract_strided_slice %32 {offsets = [0, 56], sizes = [16, 8], strides = [1, 1]} : vector<16x96xf32> to vector<16x8xf32>
    %42 = tpu.concatenate %38, %39, %40, %41 in 0 : vector<16x8xf32>, vector<16x8xf32>, vector<16x8xf32>, vector<16x8xf32> -> vector<64x8xf32>
    %43 = vector.extract_strided_slice %32 {offsets = [0, 64], sizes = [16, 8], strides = [1, 1]} : vector<16x96xf32> to vector<16x8xf32>
    %44 = vector.extract_strided_slice %32 {offsets = [0, 72], sizes = [16, 8], strides = [1, 1]} : vector<16x96xf32> to vector<16x8xf32>
    %45 = vector.extract_strided_slice %32 {offsets = [0, 80], sizes = [16, 8], strides = [1, 1]} : vector<16x96xf32> to vector<16x8xf32>
    %46 = vector.extract_strided_slice %32 {offsets = [0, 88], sizes = [16, 8], strides = [1, 1]} : vector<16x96xf32> to vector<16x8xf32>
    %47 = tpu.concatenate %43, %44, %45, %46 in 0 : vector<16x8xf32>, vector<16x8xf32>, vector<16x8xf32>, vector<16x8xf32> -> vector<64x8xf32>
    %cst_19 = arith.constant dense<0.000000e+00> : vector<64x64xf32>
    %48 = tpu.matmul %37, %42, %cst_19 {dimension_numbers = #tpu.dot_dimension_numbers<[1], [1], [0], [0], [0, 0, 1, 0], [], []>} : vector<64x8xf32>, vector<64x8xf32>, vector<64x64xf32> -> vector<64x64xf32>
    %49 = arith.addf %48, %27 : vector<64x64xf32>
    %cst_20 = arith.constant dense<0xFF800000> : vector<64xf32>
    %50 = vector.multi_reduction <maximumf>, %49, %cst_20 [1] : vector<64x64xf32> to vector<64xf32>
    %51 = vector.shape_cast %50 : vector<64xf32> to vector<64x1xf32>
    %52 = vector.broadcast %51 : vector<64x1xf32> to vector<64x64xf32>
    %53 = arith.subf %49, %52 : vector<64x64xf32>
    %54 = math.exp %53 : vector<64x64xf32>
    %cst_21 = arith.constant dense<0.000000e+00> : vector<64xf32>
    %55 = vector.multi_reduction <add>, %54, %cst_21 [1] : vector<64x64xf32> to vector<64xf32>
    %56 = vector.shape_cast %55 : vector<64xf32> to vector<64x1xf32>
    %57 = tpu.reciprocal %56 {approx = true} : vector<64x1xf32> -> vector<64x1xf32>
    %58 = vector.broadcast %57 : vector<64x1xf32> to vector<64x64xf32>
    %59 = arith.mulf %54, %58 : vector<64x64xf32>
    %cst_22 = arith.constant dense<0.000000e+00> : vector<64x8xf32>
    %60 = tpu.matmul %59, %47, %cst_22 {dimension_numbers = #tpu.dot_dimension_numbers<[1], [0], [0], [1], [0, 0, 1, 1], [], []>} : vector<64x64xf32>, vector<64x8xf32>, vector<64x8xf32> -> vector<64x8xf32>
    %61 = vector.extract_strided_slice %60 {offsets = [0, 0], sizes = [16, 8], strides = [1, 1]} : vector<64x8xf32> to vector<16x8xf32>
    %62 = vector.extract_strided_slice %60 {offsets = [16, 0], sizes = [16, 8], strides = [1, 1]} : vector<64x8xf32> to vector<16x8xf32>
    %63 = vector.extract_strided_slice %60 {offsets = [32, 0], sizes = [16, 8], strides = [1, 1]} : vector<64x8xf32> to vector<16x8xf32>
    %64 = vector.extract_strided_slice %60 {offsets = [48, 0], sizes = [16, 8], strides = [1, 1]} : vector<64x8xf32> to vector<16x8xf32>
    %65 = tpu.concatenate %61, %62, %63, %64 in 1 : vector<16x8xf32>, vector<16x8xf32>, vector<16x8xf32>, vector<16x8xf32> -> vector<16x32xf32>
    %c0_23 = arith.constant 0 : index
    %c0_24 = arith.constant 0 : index
    %66 = vector.load %arg8[%c0_23, %c0_24] : memref<32x32xf32, #tpu.memory_space<vmem>>, vector<32x32xf32>
    %cst_25 = arith.constant dense<0.000000e+00> : vector<16x32xf32>
    %67 = tpu.matmul %65, %66, %cst_25 {dimension_numbers = #tpu.dot_dimension_numbers<[1], [0], [0], [1], [0, 0, 1, 1], [], []>} : vector<16x32xf32>, vector<32x32xf32>, vector<16x32xf32> -> vector<16x32xf32>
    %c0_26 = arith.constant 0 : index
    %c0_27 = arith.constant 0 : index
    %68 = vector.load %arg9[%c0_26, %c0_27] : memref<1x32xf32, #tpu.memory_space<vmem>>, vector<1x32xf32>
    %69 = vector.broadcast %68 : vector<1x32xf32> to vector<16x32xf32>
    %70 = arith.addf %67, %69 : vector<16x32xf32>
    %71 = arith.addf %26, %70 : vector<16x32xf32>
    %c0_28 = arith.constant 0 : index
    %c0_29 = arith.constant 0 : index
    %72 = vector.load %arg10[%c0_28, %c0_29] : memref<1x32xf32, #tpu.memory_space<vmem>>, vector<1x32xf32>
    %c0_30 = arith.constant 0 : index
    %c0_31 = arith.constant 0 : index
    %73 = vector.load %arg11[%c0_30, %c0_31] : memref<1x32xf32, #tpu.memory_space<vmem>>, vector<1x32xf32>
    %cst_32 = arith.constant dense<0.000000e+00> : vector<16xf32>
    %74 = vector.multi_reduction <add>, %71, %cst_32 [1] : vector<16x32xf32> to vector<16xf32>
    %75 = vector.shape_cast %74 : vector<16xf32> to vector<16x1xf32>
    %cst_33 = arith.constant 3.200000e+01 : f32
    %76 = vector.broadcast %cst_33 : f32 to vector<16x1xf32>
    %77 = arith.divf %75, %76 : vector<16x1xf32>
    %78 = vector.broadcast %77 : vector<16x1xf32> to vector<16x32xf32>
    %79 = arith.subf %71, %78 : vector<16x32xf32>
    %80 = arith.mulf %79, %79 : vector<16x32xf32>
    %cst_34 = arith.constant dense<0.000000e+00> : vector<16xf32>
    %81 = vector.multi_reduction <add>, %80, %cst_34 [1] : vector<16x32xf32> to vector<16xf32>
    %82 = vector.shape_cast %81 : vector<16xf32> to vector<16x1xf32>
    %cst_35 = arith.constant 3.200000e+01 : f32
    %83 = vector.broadcast %cst_35 : f32 to vector<16x1xf32>
    %84 = arith.divf %82, %83 : vector<16x1xf32>
    %85 = vector.broadcast %77 : vector<16x1xf32> to vector<16x32xf32>
    %86 = arith.subf %71, %85 : vector<16x32xf32>
    %cst_36 = arith.constant 9.99999996E-13 : f32
    %87 = vector.broadcast %cst_36 : f32 to vector<16x1xf32>
    %88 = arith.addf %84, %87 : vector<16x1xf32>
    %89 = math.rsqrt %88 : vector<16x1xf32>
    %90 = vector.broadcast %89 : vector<16x1xf32> to vector<16x32xf32>
    %91 = arith.mulf %86, %90 : vector<16x32xf32>
    %92 = vector.broadcast %72 : vector<1x32xf32> to vector<16x32xf32>
    %93 = arith.mulf %91, %92 : vector<16x32xf32>
    %94 = vector.broadcast %73 : vector<1x32xf32> to vector<16x32xf32>
    %95 = arith.addf %93, %94 : vector<16x32xf32>
    %c0_37 = arith.constant 0 : index
    %c0_38 = arith.constant 0 : index
    %96 = vector.load %arg12[%c0_37, %c0_38] : memref<32x64xf32, #tpu.memory_space<vmem>>, vector<32x64xf32>
    %cst_39 = arith.constant dense<0.000000e+00> : vector<16x64xf32>
    %97 = tpu.matmul %95, %96, %cst_39 {dimension_numbers = #tpu.dot_dimension_numbers<[1], [0], [0], [1], [0, 0, 1, 1], [], []>} : vector<16x32xf32>, vector<32x64xf32>, vector<16x64xf32> -> vector<16x64xf32>
    %c0_40 = arith.constant 0 : index
    %c0_41 = arith.constant 0 : index
    %98 = vector.load %arg13[%c0_40, %c0_41] : memref<1x64xf32, #tpu.memory_space<vmem>>, vector<1x64xf32>
    %99 = vector.broadcast %98 : vector<1x64xf32> to vector<16x64xf32>
    %100 = arith.addf %97, %99 : vector<16x64xf32>
    %cst_42 = arith.constant 5.000000e-01 : f32
    %101 = vector.broadcast %cst_42 : f32 to vector<16x64xf32>
    %102 = arith.mulf %101, %100 : vector<16x64xf32>
    %cst_43 = arith.constant 4.471500e-02 : f32
    %103 = vector.broadcast %cst_43 : f32 to vector<16x64xf32>
    %104 = arith.mulf %103, %100 : vector<16x64xf32>
    %105 = arith.mulf %104, %100 : vector<16x64xf32>
    %106 = arith.mulf %105, %100 : vector<16x64xf32>
    %107 = arith.addf %100, %106 : vector<16x64xf32>
    %cst_44 = arith.constant 0.797884583 : f32
    %108 = vector.broadcast %cst_44 : f32 to vector<16x64xf32>
    %109 = arith.mulf %108, %107 : vector<16x64xf32>
    %110 = math.tanh %109 : vector<16x64xf32>
    %cst_45 = arith.constant 1.000000e+00 : f32
    %111 = vector.broadcast %cst_45 : f32 to vector<16x64xf32>
    %112 = arith.addf %111, %110 : vector<16x64xf32>
    %113 = arith.mulf %102, %112 : vector<16x64xf32>
    %c0_46 = arith.constant 0 : index
    %c0_47 = arith.constant 0 : index
    %114 = vector.load %arg14[%c0_46, %c0_47] : memref<64x32xf32, #tpu.memory_space<vmem>>, vector<64x32xf32>
    %cst_48 = arith.constant dense<0.000000e+00> : vector<16x32xf32>
    %115 = tpu.matmul %113, %114, %cst_48 {dimension_numbers = #tpu.dot_dimension_numbers<[1], [0], [0], [1], [0, 0, 1, 1], [], []>} : vector<16x64xf32>, vector<64x32xf32>, vector<16x32xf32> -> vector<16x32xf32>
    %c0_49 = arith.constant 0 : index
    %c0_50 = arith.constant 0 : index
    %116 = vector.load %arg15[%c0_49, %c0_50] : memref<1x32xf32, #tpu.memory_space<vmem>>, vector<1x32xf32>
    %117 = vector.broadcast %116 : vector<1x32xf32> to vector<16x32xf32>
    %118 = arith.addf %115, %117 : vector<16x32xf32>
    %119 = arith.addf %95, %118 : vector<16x32xf32>
    %c0_51 = arith.constant 0 : index
    %c0_52 = arith.constant 0 : index
    %120 = vector.load %arg16[%c0_51, %c0_52] : memref<1x32xf32, #tpu.memory_space<vmem>>, vector<1x32xf32>
    %c0_53 = arith.constant 0 : index
    %c0_54 = arith.constant 0 : index
    %121 = vector.load %arg17[%c0_53, %c0_54] : memref<1x32xf32, #tpu.memory_space<vmem>>, vector<1x32xf32>
    %cst_55 = arith.constant dense<0.000000e+00> : vector<16xf32>
    %122 = vector.multi_reduction <add>, %119, %cst_55 [1] : vector<16x32xf32> to vector<16xf32>
    %123 = vector.shape_cast %122 : vector<16xf32> to vector<16x1xf32>
    %cst_56 = arith.constant 3.200000e+01 : f32
    %124 = vector.broadcast %cst_56 : f32 to vector<16x1xf32>
    %125 = arith.divf %123, %124 : vector<16x1xf32>
    %126 = vector.broadcast %125 : vector<16x1xf32> to vector<16x32xf32>
    %127 = arith.subf %119, %126 : vector<16x32xf32>
    %128 = arith.mulf %127, %127 : vector<16x32xf32>
    %cst_57 = arith.constant dense<0.000000e+00> : vector<16xf32>
    %129 = vector.multi_reduction <add>, %128, %cst_57 [1] : vector<16x32xf32> to vector<16xf32>
    %130 = vector.shape_cast %129 : vector<16xf32> to vector<16x1xf32>
    %cst_58 = arith.constant 3.200000e+01 : f32
    %131 = vector.broadcast %cst_58 : f32 to vector<16x1xf32>
    %132 = arith.divf %130, %131 : vector<16x1xf32>
    %133 = vector.broadcast %125 : vector<16x1xf32> to vector<16x32xf32>
    %134 = arith.subf %119, %133 : vector<16x32xf32>
    %cst_59 = arith.constant 9.99999996E-13 : f32
    %135 = vector.broadcast %cst_59 : f32 to vector<16x1xf32>
    %136 = arith.addf %132, %135 : vector<16x1xf32>
    %137 = math.rsqrt %136 : vector<16x1xf32>
    %138 = vector.broadcast %137 : vector<16x1xf32> to vector<16x32xf32>
    %139 = arith.mulf %134, %138 : vector<16x32xf32>
    %140 = vector.broadcast %120 : vector<1x32xf32> to vector<16x32xf32>
    %141 = arith.mulf %139, %140 : vector<16x32xf32>
    %142 = vector.broadcast %121 : vector<1x32xf32> to vector<16x32xf32>
    %143 = arith.addf %141, %142 : vector<16x32xf32>
    %c0_60 = arith.constant 0 : index
    %c0_61 = arith.constant 0 : index
    %144 = vector.load %arg18[%c0_60, %c0_61] : memref<32x96xf32, #tpu.memory_space<vmem>>, vector<32x96xf32>
    %cst_62 = arith.constant dense<0.000000e+00> : vector<16x96xf32>
    %145 = tpu.matmul %143, %144, %cst_62 {dimension_numbers = #tpu.dot_dimension_numbers<[1], [0], [0], [1], [0, 0, 1, 1], [], []>} : vector<16x32xf32>, vector<32x96xf32>, vector<16x96xf32> -> vector<16x96xf32>
    %c0_63 = arith.constant 0 : index
    %c0_64 = arith.constant 0 : index
    %146 = vector.load %arg19[%c0_63, %c0_64] : memref<1x96xf32, #tpu.memory_space<vmem>>, vector<1x96xf32>
    %147 = vector.broadcast %146 : vector<1x96xf32> to vector<16x96xf32>
    %148 = arith.addf %145, %147 : vector<16x96xf32>
    %149 = vector.extract_strided_slice %148 {offsets = [0, 0], sizes = [16, 8], strides = [1, 1]} : vector<16x96xf32> to vector<16x8xf32>
    %150 = vector.extract_strided_slice %148 {offsets = [0, 8], sizes = [16, 8], strides = [1, 1]} : vector<16x96xf32> to vector<16x8xf32>
    %151 = vector.extract_strided_slice %148 {offsets = [0, 16], sizes = [16, 8], strides = [1, 1]} : vector<16x96xf32> to vector<16x8xf32>
    %152 = vector.extract_strided_slice %148 {offsets = [0, 24], sizes = [16, 8], strides = [1, 1]} : vector<16x96xf32> to vector<16x8xf32>
    %153 = tpu.concatenate %149, %150, %151, %152 in 0 : vector<16x8xf32>, vector<16x8xf32>, vector<16x8xf32>, vector<16x8xf32> -> vector<64x8xf32>
    %154 = vector.extract_strided_slice %148 {offsets = [0, 32], sizes = [16, 8], strides = [1, 1]} : vector<16x96xf32> to vector<16x8xf32>
    %155 = vector.extract_strided_slice %148 {offsets = [0, 40], sizes = [16, 8], strides = [1, 1]} : vector<16x96xf32> to vector<16x8xf32>
    %156 = vector.extract_strided_slice %148 {offsets = [0, 48], sizes = [16, 8], strides = [1, 1]} : vector<16x96xf32> to vector<16x8xf32>
    %157 = vector.extract_strided_slice %148 {offsets = [0, 56], sizes = [16, 8], strides = [1, 1]} : vector<16x96xf32> to vector<16x8xf32>
    %158 = tpu.concatenate %154, %155, %156, %157 in 0 : vector<16x8xf32>, vector<16x8xf32>, vector<16x8xf32>, vector<16x8xf32> -> vector<64x8xf32>
    %159 = vector.extract_strided_slice %148 {offsets = [0, 64], sizes = [16, 8], strides = [1, 1]} : vector<16x96xf32> to vector<16x8xf32>
    %160 = vector.extract_strided_slice %148 {offsets = [0, 72], sizes = [16, 8], strides = [1, 1]} : vector<16x96xf32> to vector<16x8xf32>
    %161 = vector.extract_strided_slice %148 {offsets = [0, 80], sizes = [16, 8], strides = [1, 1]} : vector<16x96xf32> to vector<16x8xf32>
    %162 = vector.extract_strided_slice %148 {offsets = [0, 88], sizes = [16, 8], strides = [1, 1]} : vector<16x96xf32> to vector<16x8xf32>
    %163 = tpu.concatenate %159, %160, %161, %162 in 0 : vector<16x8xf32>, vector<16x8xf32>, vector<16x8xf32>, vector<16x8xf32> -> vector<64x8xf32>
    %cst_65 = arith.constant dense<0.000000e+00> : vector<64x64xf32>
    %164 = tpu.matmul %153, %158, %cst_65 {dimension_numbers = #tpu.dot_dimension_numbers<[1], [1], [0], [0], [0, 0, 1, 0], [], []>} : vector<64x8xf32>, vector<64x8xf32>, vector<64x64xf32> -> vector<64x64xf32>
    %165 = arith.addf %164, %27 : vector<64x64xf32>
    %cst_66 = arith.constant dense<0xFF800000> : vector<64xf32>
    %166 = vector.multi_reduction <maximumf>, %165, %cst_66 [1] : vector<64x64xf32> to vector<64xf32>
    %167 = vector.shape_cast %166 : vector<64xf32> to vector<64x1xf32>
    %168 = vector.broadcast %167 : vector<64x1xf32> to vector<64x64xf32>
    %169 = arith.subf %165, %168 : vector<64x64xf32>
    %170 = math.exp %169 : vector<64x64xf32>
    %cst_67 = arith.constant dense<0.000000e+00> : vector<64xf32>
    %171 = vector.multi_reduction <add>, %170, %cst_67 [1] : vector<64x64xf32> to vector<64xf32>
    %172 = vector.shape_cast %171 : vector<64xf32> to vector<64x1xf32>
    %173 = tpu.reciprocal %172 {approx = true} : vector<64x1xf32> -> vector<64x1xf32>
    %174 = vector.broadcast %173 : vector<64x1xf32> to vector<64x64xf32>
    %175 = arith.mulf %170, %174 : vector<64x64xf32>
    %cst_68 = arith.constant dense<0.000000e+00> : vector<64x8xf32>
    %176 = tpu.matmul %175, %163, %cst_68 {dimension_numbers = #tpu.dot_dimension_numbers<[1], [0], [0], [1], [0, 0, 1, 1], [], []>} : vector<64x64xf32>, vector<64x8xf32>, vector<64x8xf32> -> vector<64x8xf32>
    %177 = vector.extract_strided_slice %176 {offsets = [0, 0], sizes = [16, 8], strides = [1, 1]} : vector<64x8xf32> to vector<16x8xf32>
    %178 = vector.extract_strided_slice %176 {offsets = [16, 0], sizes = [16, 8], strides = [1, 1]} : vector<64x8xf32> to vector<16x8xf32>
    %179 = vector.extract_strided_slice %176 {offsets = [32, 0], sizes = [16, 8], strides = [1, 1]} : vector<64x8xf32> to vector<16x8xf32>
    %180 = vector.extract_strided_slice %176 {offsets = [48, 0], sizes = [16, 8], strides = [1, 1]} : vector<64x8xf32> to vector<16x8xf32>
    %181 = tpu.concatenate %177, %178, %179, %180 in 1 : vector<16x8xf32>, vector<16x8xf32>, vector<16x8xf32>, vector<16x8xf32> -> vector<16x32xf32>
    %c0_69 = arith.constant 0 : index
    %c0_70 = arith.constant 0 : index
    %182 = vector.load %arg20[%c0_69, %c0_70] : memref<32x32xf32, #tpu.memory_space<vmem>>, vector<32x32xf32>
    %cst_71 = arith.constant dense<0.000000e+00> : vector<16x32xf32>
    %183 = tpu.matmul %181, %182, %cst_71 {dimension_numbers = #tpu.dot_dimension_numbers<[1], [0], [0], [1], [0, 0, 1, 1], [], []>} : vector<16x32xf32>, vector<32x32xf32>, vector<16x32xf32> -> vector<16x32xf32>
    %c0_72 = arith.constant 0 : index
    %c0_73 = arith.constant 0 : index
    %184 = vector.load %arg21[%c0_72, %c0_73] : memref<1x32xf32, #tpu.memory_space<vmem>>, vector<1x32xf32>
    %185 = vector.broadcast %184 : vector<1x32xf32> to vector<16x32xf32>
    %186 = arith.addf %183, %185 : vector<16x32xf32>
    %187 = arith.addf %143, %186 : vector<16x32xf32>
    %c0_74 = arith.constant 0 : index
    %c0_75 = arith.constant 0 : index
    %188 = vector.load %arg22[%c0_74, %c0_75] : memref<1x32xf32, #tpu.memory_space<vmem>>, vector<1x32xf32>
    %c0_76 = arith.constant 0 : index
    %c0_77 = arith.constant 0 : index
    %189 = vector.load %arg23[%c0_76, %c0_77] : memref<1x32xf32, #tpu.memory_space<vmem>>, vector<1x32xf32>
    %cst_78 = arith.constant dense<0.000000e+00> : vector<16xf32>
    %190 = vector.multi_reduction <add>, %187, %cst_78 [1] : vector<16x32xf32> to vector<16xf32>
    %191 = vector.shape_cast %190 : vector<16xf32> to vector<16x1xf32>
    %cst_79 = arith.constant 3.200000e+01 : f32
    %192 = vector.broadcast %cst_79 : f32 to vector<16x1xf32>
    %193 = arith.divf %191, %192 : vector<16x1xf32>
    %194 = vector.broadcast %193 : vector<16x1xf32> to vector<16x32xf32>
    %195 = arith.subf %187, %194 : vector<16x32xf32>
    %196 = arith.mulf %195, %195 : vector<16x32xf32>
    %cst_80 = arith.constant dense<0.000000e+00> : vector<16xf32>
    %197 = vector.multi_reduction <add>, %196, %cst_80 [1] : vector<16x32xf32> to vector<16xf32>
    %198 = vector.shape_cast %197 : vector<16xf32> to vector<16x1xf32>
    %cst_81 = arith.constant 3.200000e+01 : f32
    %199 = vector.broadcast %cst_81 : f32 to vector<16x1xf32>
    %200 = arith.divf %198, %199 : vector<16x1xf32>
    %201 = vector.broadcast %193 : vector<16x1xf32> to vector<16x32xf32>
    %202 = arith.subf %187, %201 : vector<16x32xf32>
    %cst_82 = arith.constant 9.99999996E-13 : f32
    %203 = vector.broadcast %cst_82 : f32 to vector<16x1xf32>
    %204 = arith.addf %200, %203 : vector<16x1xf32>
    %205 = math.rsqrt %204 : vector<16x1xf32>
    %206 = vector.broadcast %205 : vector<16x1xf32> to vector<16x32xf32>
    %207 = arith.mulf %202, %206 : vector<16x32xf32>
    %208 = vector.broadcast %188 : vector<1x32xf32> to vector<16x32xf32>
    %209 = arith.mulf %207, %208 : vector<16x32xf32>
    %210 = vector.broadcast %189 : vector<1x32xf32> to vector<16x32xf32>
    %211 = arith.addf %209, %210 : vector<16x32xf32>
    %c0_83 = arith.constant 0 : index
    %c0_84 = arith.constant 0 : index
    %212 = vector.load %arg24[%c0_83, %c0_84] : memref<32x64xf32, #tpu.memory_space<vmem>>, vector<32x64xf32>
    %cst_85 = arith.constant dense<0.000000e+00> : vector<16x64xf32>
    %213 = tpu.matmul %211, %212, %cst_85 {dimension_numbers = #tpu.dot_dimension_numbers<[1], [0], [0], [1], [0, 0, 1, 1], [], []>} : vector<16x32xf32>, vector<32x64xf32>, vector<16x64xf32> -> vector<16x64xf32>
    %c0_86 = arith.constant 0 : index
    %c0_87 = arith.constant 0 : index
    %214 = vector.load %arg25[%c0_86, %c0_87] : memref<1x64xf32, #tpu.memory_space<vmem>>, vector<1x64xf32>
    %215 = vector.broadcast %214 : vector<1x64xf32> to vector<16x64xf32>
    %216 = arith.addf %213, %215 : vector<16x64xf32>
    %cst_88 = arith.constant 5.000000e-01 : f32
    %217 = vector.broadcast %cst_88 : f32 to vector<16x64xf32>
    %218 = arith.mulf %217, %216 : vector<16x64xf32>
    %cst_89 = arith.constant 4.471500e-02 : f32
    %219 = vector.broadcast %cst_89 : f32 to vector<16x64xf32>
    %220 = arith.mulf %219, %216 : vector<16x64xf32>
    %221 = arith.mulf %220, %216 : vector<16x64xf32>
    %222 = arith.mulf %221, %216 : vector<16x64xf32>
    %223 = arith.addf %216, %222 : vector<16x64xf32>
    %cst_90 = arith.constant 0.797884583 : f32
    %224 = vector.broadcast %cst_90 : f32 to vector<16x64xf32>
    %225 = arith.mulf %224, %223 : vector<16x64xf32>
    %226 = math.tanh %225 : vector<16x64xf32>
    %cst_91 = arith.constant 1.000000e+00 : f32
    %227 = vector.broadcast %cst_91 : f32 to vector<16x64xf32>
    %228 = arith.addf %227, %226 : vector<16x64xf32>
    %229 = arith.mulf %218, %228 : vector<16x64xf32>
    %c0_92 = arith.constant 0 : index
    %c0_93 = arith.constant 0 : index
    %230 = vector.load %arg26[%c0_92, %c0_93] : memref<64x32xf32, #tpu.memory_space<vmem>>, vector<64x32xf32>
    %cst_94 = arith.constant dense<0.000000e+00> : vector<16x32xf32>
    %231 = tpu.matmul %229, %230, %cst_94 {dimension_numbers = #tpu.dot_dimension_numbers<[1], [0], [0], [1], [0, 0, 1, 1], [], []>} : vector<16x64xf32>, vector<64x32xf32>, vector<16x32xf32> -> vector<16x32xf32>
    %c0_95 = arith.constant 0 : index
    %c0_96 = arith.constant 0 : index
    %232 = vector.load %arg27[%c0_95, %c0_96] : memref<1x32xf32, #tpu.memory_space<vmem>>, vector<1x32xf32>
    %233 = vector.broadcast %232 : vector<1x32xf32> to vector<16x32xf32>
    %234 = arith.addf %231, %233 : vector<16x32xf32>
    %235 = arith.addf %211, %234 : vector<16x32xf32>
    %c0_97 = arith.constant 0 : index
    %c0_98 = arith.constant 0 : index
    %236 = vector.load %arg28[%c0_97, %c0_98] : memref<1x32xf32, #tpu.memory_space<vmem>>, vector<1x32xf32>
    %c0_99 = arith.constant 0 : index
    %c0_100 = arith.constant 0 : index
    %237 = vector.load %arg29[%c0_99, %c0_100] : memref<1x32xf32, #tpu.memory_space<vmem>>, vector<1x32xf32>
    %cst_101 = arith.constant dense<0.000000e+00> : vector<16xf32>
    %238 = vector.multi_reduction <add>, %235, %cst_101 [1] : vector<16x32xf32> to vector<16xf32>
    %239 = vector.shape_cast %238 : vector<16xf32> to vector<16x1xf32>
    %cst_102 = arith.constant 3.200000e+01 : f32
    %240 = vector.broadcast %cst_102 : f32 to vector<16x1xf32>
    %241 = arith.divf %239, %240 : vector<16x1xf32>
    %242 = vector.broadcast %241 : vector<16x1xf32> to vector<16x32xf32>
    %243 = arith.subf %235, %242 : vector<16x32xf32>
    %244 = arith.mulf %243, %243 : vector<16x32xf32>
    %cst_103 = arith.constant dense<0.000000e+00> : vector<16xf32>
    %245 = vector.multi_reduction <add>, %244, %cst_103 [1] : vector<16x32xf32> to vector<16xf32>
    %246 = vector.shape_cast %245 : vector<16xf32> to vector<16x1xf32>
    %cst_104 = arith.constant 3.200000e+01 : f32
    %247 = vector.broadcast %cst_104 : f32 to vector<16x1xf32>
    %248 = arith.divf %246, %247 : vector<16x1xf32>
    %249 = vector.broadcast %241 : vector<16x1xf32> to vector<16x32xf32>
    %250 = arith.subf %235, %249 : vector<16x32xf32>
    %cst_105 = arith.constant 9.99999996E-13 : f32
    %251 = vector.broadcast %cst_105 : f32 to vector<16x1xf32>
    %252 = arith.addf %248, %251 : vector<16x1xf32>
    %253 = math.rsqrt %252 : vector<16x1xf32>
    %254 = vector.broadcast %253 : vector<16x1xf32> to vector<16x32xf32>
    %255 = arith.mulf %250, %254 : vector<16x32xf32>
    %256 = vector.broadcast %236 : vector<1x32xf32> to vector<16x32xf32>
    %257 = arith.mulf %255, %256 : vector<16x32xf32>
    %258 = vector.broadcast %237 : vector<1x32xf32> to vector<16x32xf32>
    %259 = arith.addf %257, %258 : vector<16x32xf32>
    %c0_106 = arith.constant 0 : index
    %c0_107 = arith.constant 0 : index
    %260 = vector.load %arg5[%c0_106, %c0_107] : memref<2x16xf32, #tpu.memory_space<vmem>>, vector<2x16xf32>
    %cst_108 = arith.constant dense<0.000000e+00> : vector<2x32xf32>
    %261 = tpu.matmul %260, %259, %cst_108 {dimension_numbers = #tpu.dot_dimension_numbers<[1], [0], [0], [1], [0, 0, 1, 1], [], []>} : vector<2x16xf32>, vector<16x32xf32>, vector<2x32xf32> -> vector<2x32xf32>
    %c0_109 = arith.constant 0 : index
    %c0_110 = arith.constant 0 : index
    %262 = vector.load %arg30[%c0_109, %c0_110] : memref<32x32xf32, #tpu.memory_space<vmem>>, vector<32x32xf32>
    %cst_111 = arith.constant dense<0.000000e+00> : vector<2x32xf32>
    %263 = tpu.matmul %261, %262, %cst_111 {dimension_numbers = #tpu.dot_dimension_numbers<[1], [0], [0], [1], [0, 0, 1, 1], [], []>} : vector<2x32xf32>, vector<32x32xf32>, vector<2x32xf32> -> vector<2x32xf32>
    %c0_112 = arith.constant 0 : index
    %c0_113 = arith.constant 0 : index
    %264 = vector.load %arg31[%c0_112, %c0_113] : memref<1x32xf32, #tpu.memory_space<vmem>>, vector<1x32xf32>
    %265 = vector.broadcast %264 : vector<1x32xf32> to vector<2x32xf32>
    %266 = arith.addf %263, %265 : vector<2x32xf32>
    %cst_114 = arith.constant 0.000000e+00 : f32
    %267 = vector.broadcast %cst_114 : f32 to vector<2x32xf32>
    %268 = arith.maximumf %266, %267 : vector<2x32xf32>
    %c0_115 = arith.constant 0 : index
    %c0_116 = arith.constant 0 : index
    %269 = vector.load %arg32[%c0_115, %c0_116] : memref<32x2xf32, #tpu.memory_space<vmem>>, vector<32x2xf32>
    %cst_117 = arith.constant dense<0.000000e+00> : vector<2x2xf32>
    %270 = tpu.matmul %268, %269, %cst_117 {dimension_numbers = #tpu.dot_dimension_numbers<[1], [0], [0], [1], [0, 0, 1, 1], [], []>} : vector<2x32xf32>, vector<32x2xf32>, vector<2x2xf32> -> vector<2x2xf32>
    %c0_118 = arith.constant 0 : index
    %c0_119 = arith.constant 0 : index
    %271 = vector.load %arg33[%c0_118, %c0_119] : memref<1x2xf32, #tpu.memory_space<vmem>>, vector<1x2xf32>
    %272 = vector.broadcast %271 : vector<1x2xf32> to vector<2x2xf32>
    %273 = arith.addf %270, %272 : vector<2x2xf32>
    %c0_120 = arith.constant 0 : index
    %c0_121 = arith.constant 0 : index
    %274 = vector.load %arg34[%c0_120, %c0_121] : memref<2x2xf32, #tpu.memory_space<vmem>>, vector<2x2xf32>
    tpu.vector_store %arg34[%c0_120, %c0_121], %273 {strides = array<i32>} : memref<2x2xf32, #tpu.memory_space<vmem>>, vector<2x2xf32>,
    return
  }
}

</mosaic_0001>

<llo_original>
// kernel: tile.15
$region0: #{tile.15}
  %s0 = inlined_call_operand.vmem [shape: f32[2,8], index: 0, kind: input, shape index: {}]
  %s1 = inlined_call_operand.vmem [shape: f32[16], index: 1, kind: output, shape index: {}]
  $region1: #{tile.15} parent=0
    #allocation0 [shape = 'u8[4096]{0}', space=vmem, size = 0x1000, scoped, tag = 'scoped mem for output reshape']
    #allocation1 [shape = 'u8[4096]{0}', space=vmem, size = 0x1000, scoped, tag = 'scoped mem for input reshape']
    %s3 = sshllo.u32 0, 2
    %v4 = vld [vmem:[%s0] sm:%s3]
    %5 = vst [vmem:[#allocation1] sm:%s3] %v4
    %v6 = vld [vmem:[#allocation1] sm:$0x1]
    %vm7 = vcmask 64512
    %8 = vst.msk [vmem:[#allocation0] sm:$0x1] %vm7, %v6
    %s9 = scalar_lea.vmem [#allocation1], 1
    %v10 = vld [vmem:[%s9] sm:$0x1]
    %11 = vrot.lane.b32.xlu0 %v10, 8
    %v12 = vpop.permute.xlu0 %11
    %vm13 = vcmask 130112
    %14 = vst.msk [vmem:[#allocation0] sm:$0x1] %vm13, %v12
    %s16 = sshllo.u32 0, 1
    %v18 = vld [vmem:[#allocation0] sm:%s16]
    %s19 = sshllo.u32 0, 1
    %20 = vst [vmem:[%s1] sm:%s19] %v18

// kernel: tile.16
$region0: #{tile.16}
  #allocation0 [shape = 's32[1]{0}', space=sflag, size = 0x4, scoped, tag = 'scoped memory for tile.16']
  %s0 = inlined_call_operand.vmem [shape: f32[16], index: 0, kind: input, shape index: {}]
  %s1 = inlined_call_operand.vmem [shape: f32[4,16], index: 1, kind: output, shape index: {}]
  // Predicated region
  $region2: #{tile.16} parent=0 // pred_check
    _
  $region3: #{tile.16} parent=0 // pred_check_branch
    %3 = sbr.rel (0) target = $region5
  $region4: #{tile.16} parent=0 // pred_region
    _
  $region5: #{tile.16} parent=0 // pred_fallthru
    _
  %v4 = vld [vmem:[%s0] ss:$0 sm:$0xff]
  %5 = vst [vmem:[%s1] sm:$0xf] %v4

// kernel: mul.24
$region0: #{mul.24}
  %s0 = inlined_call_operand.vmem [shape: f32[4,16], index: 0, kind: input, shape index: {}]
  %s1 = inlined_call_operand.vmem [shape: f32[64], index: 1, kind: output, shape index: {}]
  $region1: #{mul.24} parent=0
    #allocation0 [shape = 'u8[4096]{0}', space=vmem, size = 0x1000, scoped, tag = 'scoped mem for output reshape']
    #allocation1 [shape = 'u8[4096]{0}', space=vmem, size = 0x1000, scoped, tag = 'scoped mem for input reshape']
    %s3 = sshllo.u32 0, 4
    %v4 = vld [vmem:[%s0] sm:%s3]
    %5 = vst [vmem:[#allocation1] sm:%s3] %v4
    %v6 = vld [vmem:[#allocation1] sm:$0x1]
    %vm7 = vcmask 130048
    %8 = vst.msk [vmem:[#allocation0] sm:$0x1] %vm7, %v6
    %s9 = scalar_lea.vmem [#allocation1], 3
    %v10 = vld [vmem:[%s9] sm:$0x1]
    %11 = vrot.lane.b32.xlu0 %v10, 48
    %v12 = vpop.permute.xlu0 %11
    %vm13 = vcmask 523648
    %14 = vst.msk [vmem:[#allocation0] sm:$0x1] %vm13, %v12
    %s15 = scalar_lea.vmem [#allocation1], 2
    %v16 = vld [vmem:[%s15] sm:$0x1]
    %17 = vrot.lane.b32.xlu0 %v16, 32
    %v18 = vpop.permute.xlu0 %17
    %vm19 = vcmask 392448
    %20 = vst.msk [vmem:[#allocation0] sm:$0x1] %vm19, %v18
    %s21 = scalar_lea.vmem [#allocation1], 1
    %v22 = vld [vmem:[%s21] sm:$0x1]
    %23 = vrot.lane.b32.xlu0 %v22, 16
    %v24 = vpop.permute.xlu0 %23
    %vm25 = vcmask 261248
    %26 = vst.msk [vmem:[#allocation0] sm:$0x1] %vm25, %v24
    %s28 = sshllo.u32 0, 1
    %v30 = vld [vmem:[#allocation0] sm:%s28]
    %s31 = sshllo.u32 0, 1
    %32 = vst [vmem:[%s1] sm:%s31] %v30

// kernel: eq.15
$region0: #{eq.15}
  %s0 = inlined_call_operand.vmem [shape: s32[2,8], index: 0, kind: input, shape index: {}]
  %s1 = inlined_call_operand.vmem [shape: s32[16], index: 1, kind: output, shape index: {}]
  $region1: #{eq.15} parent=0
    #allocation0 [shape = 'u8[4096]{0}', space=vmem, size = 0x1000, scoped, tag = 'scoped mem for output reshape']
    #allocation1 [shape = 'u8[4096]{0}', space=vmem, size = 0x1000, scoped, tag = 'scoped mem for input reshape']
    %s3 = sshllo.u32 0, 2
    %v4 = vld [vmem:[%s0] sm:%s3]
    %5 = vst [vmem:[#allocation1] sm:%s3] %v4
    %v6 = vld [vmem:[#allocation1] sm:$0x1]
    %vm7 = vcmask 64512
    %8 = vst.msk [vmem:[#allocation0] sm:$0x1] %vm7, %v6
    %s9 = scalar_lea.vmem [#allocation1], 1
    %v10 = vld [vmem:[%s9] sm:$0x1]
    %11 = vrot.lane.b32.xlu0 %v10, 8
    %v12 = vpop.permute.xlu0 %11
    %vm13 = vcmask 130112
    %14 = vst.msk [vmem:[#allocation0] sm:$0x1] %vm13, %v12
    %s16 = sshllo.u32 0, 1
    %v18 = vld [vmem:[#allocation0] sm:%s16]
    %s19 = sshllo.u32 0, 1
    %20 = vst [vmem:[%s1] sm:%s19] %v18

// kernel: bert_pallas_forward.1
$region0: #{bert_pallas_forward.1}
  #allocation0 [shape = 'u32[]', space=smem, size = 0x4, offset = 0x4, fixed_abs, tag = 'smem constant byte address 0x4 - core index']
  #allocation1 [shape = 'u32[144,128]{1,0:T(1,128)}', space=vmem, size = 0x12000, scoped, tag = 'internal scratch']
  %s0 = inlined_call_operand.smem [shape: u32[35], index: -1, kind: input, shape index: {}]
  %s1 = sld [smem:[%s0]]
  %s2 = scalar_lea.smem %s0, 1
  %s3 = sld [smem:[%s2]]
  %s4 = scalar_lea.smem %s0, 2
  %s5 = sld [smem:[%s4]]
  %s6 = scalar_lea.smem %s0, 3
  %s7 = sld [smem:[%s6]]
  %s8 = scalar_lea.smem %s0, 4
  %s9 = sld [smem:[%s8]]
  %s10 = scalar_lea.smem %s0, 5
  %s11 = sld [smem:[%s10]]
  %s12 = scalar_lea.smem %s0, 6
  %s13 = sld [smem:[%s12]]
  %s14 = scalar_lea.smem %s0, 7
  %s15 = sld [smem:[%s14]]
  %s16 = scalar_lea.smem %s0, 8
  %s17 = sld [smem:[%s16]]
  %s18 = scalar_lea.smem %s0, 9
  %s19 = sld [smem:[%s18]]
  %s20 = scalar_lea.smem %s0, 10
  %s21 = sld [smem:[%s20]]
  %s22 = scalar_lea.smem %s0, 11
  %s23 = sld [smem:[%s22]]
  %s24 = scalar_lea.smem %s0, 12
  %s25 = sld [smem:[%s24]]
  %s26 = scalar_lea.smem %s0, 13
  %s27 = sld [smem:[%s26]]
  %s28 = scalar_lea.smem %s0, 14
  %s29 = sld [smem:[%s28]]
  %s30 = scalar_lea.smem %s0, 15
  %s31 = sld [smem:[%s30]]
  %s32 = scalar_lea.smem %s0, 16
  %s33 = sld [smem:[%s32]]
  %s34 = scalar_lea.smem %s0, 17
  %s35 = sld [smem:[%s34]]
  %s36 = scalar_lea.smem %s0, 18
  %s37 = sld [smem:[%s36]]
  %s38 = scalar_lea.smem %s0, 19
  %s39 = sld [smem:[%s38]]
  %s40 = scalar_lea.smem %s0, 20
  %s41 = sld [smem:[%s40]]
  %s42 = scalar_lea.smem %s0, 21
  %s43 = sld [smem:[%s42]]
  %s44 = scalar_lea.smem %s0, 22
  %s45 = sld [smem:[%s44]]
  %s46 = scalar_lea.smem %s0, 23
  %s47 = sld [smem:[%s46]]
  %s48 = scalar_lea.smem %s0, 24
  %s49 = sld [smem:[%s48]]
  %s50 = scalar_lea.smem %s0, 25
  %s51 = sld [smem:[%s50]]
  %s52 = scalar_lea.smem %s0, 26
  %s53 = sld [smem:[%s52]]
  %s54 = scalar_lea.smem %s0, 27
  %s55 = sld [smem:[%s54]]
  %s56 = scalar_lea.smem %s0, 28
  %s57 = sld [smem:[%s56]]
  %s58 = scalar_lea.smem %s0, 29
  %s59 = sld [smem:[%s58]]
  %s60 = scalar_lea.smem %s0, 30
  %s61 = sld [smem:[%s60]]
  %s62 = scalar_lea.smem %s0, 31
  %s63 = sld [smem:[%s62]]
  %s64 = scalar_lea.smem %s0, 32
  %s65 = sld [smem:[%s64]]
  %s66 = scalar_lea.smem %s0, 33
  %s67 = sld [smem:[%s66]]
  %s68 = scalar_lea.smem %s0, 34
  %s69 = sld [smem:[%s68]]
  %s70 = sld [smem:[#allocation0]]
  $region146: #{bert_pallas_forward.1} parent=0
    _
  %s72 = ssub.s32 1, %s70
  %s73 = scalar_select 0, %s72, %s70
  $region1: #{bert_pallas_forward.1} parent=0
    #allocation2 [shape = 'u8[1024]{0}', space=vmem, size = 0x400, scoped, tag = 'output window, operand 0, single buffered']
    #allocation3 [shape = 's32[1]{0}', space=sflag, size = 0x4, scoped, tag = 'scoped memory for bert_pallas_forward.1']
    %74 = vsyncpa [#allocation3], 0
    // Predicated region
    $region2: #{bert_pallas_forward.1} parent=1 // pred_check
      _
    $region3: #{bert_pallas_forward.1} parent=1 // pred_check_branch
      %76 = sbr.rel (0) target = $region5
    $region4: #{bert_pallas_forward.1} parent=1 // pred_region
      _
    $region5: #{bert_pallas_forward.1} parent=1 // pred_fallthru
      _
    // Predicated region
    $region6: #{bert_pallas_forward.1} parent=1 // pred_check
      _
    $region7: #{bert_pallas_forward.1} parent=1 // pred_check_branch
      %78 = sbr.rel (0) target = $region9
    $region8: #{bert_pallas_forward.1} parent=1 // pred_region
      _
    $region9: #{bert_pallas_forward.1} parent=1 // pred_fallthru
      _
    // Predicated region
    $region10: #{bert_pallas_forward.1} parent=1 // pred_check
      _
    $region11: #{bert_pallas_forward.1} parent=1 // pred_check_branch
      %80 = sbr.rel (0) target = $region13
    $region12: #{bert_pallas_forward.1} parent=1 // pred_region
      _
    $region13: #{bert_pallas_forward.1} parent=1 // pred_fallthru
      _
    // Predicated region
    $region14: #{bert_pallas_forward.1} parent=1 // pred_check
      _
    $region15: #{bert_pallas_forward.1} parent=1 // pred_check_branch
      %82 = sbr.rel (0) target = $region17
    $region16: #{bert_pallas_forward.1} parent=1 // pred_region
      _
    $region17: #{bert_pallas_forward.1} parent=1 // pred_fallthru
      _
    // Predicated region
    $region18: #{bert_pallas_forward.1} parent=1 // pred_check
      _
    $region19: #{bert_pallas_forward.1} parent=1 // pred_check_branch
      %84 = sbr.rel (0) target = $region21
    $region20: #{bert_pallas_forward.1} parent=1 // pred_region
      _
    $region21: #{bert_pallas_forward.1} parent=1 // pred_fallthru
      _
    // Predicated region
    $region22: #{bert_pallas_forward.1} parent=1 // pred_check
      _
    $region23: #{bert_pallas_forward.1} parent=1 // pred_check_branch
      %86 = sbr.rel (0) target = $region25
    $region24: #{bert_pallas_forward.1} parent=1 // pred_region
      _
    $region25: #{bert_pallas_forward.1} parent=1 // pred_fallthru
      _
    // Predicated region
    $region26: #{bert_pallas_forward.1} parent=1 // pred_check
      _
    $region27: #{bert_pallas_forward.1} parent=1 // pred_check_branch
      %88 = sbr.rel (0) target = $region29
    $region28: #{bert_pallas_forward.1} parent=1 // pred_region
      _
    $region29: #{bert_pallas_forward.1} parent=1 // pred_fallthru
      _
    // Predicated region
    $region30: #{bert_pallas_forward.1} parent=1 // pred_check
      _
    $region31: #{bert_pallas_forward.1} parent=1 // pred_check_branch
      %90 = sbr.rel (0) target = $region33
    $region32: #{bert_pallas_forward.1} parent=1 // pred_region
      _
    $region33: #{bert_pallas_forward.1} parent=1 // pred_fallthru
      _
    // Predicated region
    $region34: #{bert_pallas_forward.1} parent=1 // pred_check
      _
    $region35: #{bert_pallas_forward.1} parent=1 // pred_check_branch
      %92 = sbr.rel (0) target = $region37
    $region36: #{bert_pallas_forward.1} parent=1 // pred_region
      _
    $region37: #{bert_pallas_forward.1} parent=1 // pred_fallthru
      _
    // Predicated region
    $region38: #{bert_pallas_forward.1} parent=1 // pred_check
      _
    $region39: #{bert_pallas_forward.1} parent=1 // pred_check_branch
      %94 = sbr.rel (0) target = $region41
    $region40: #{bert_pallas_forward.1} parent=1 // pred_region
      _
    $region41: #{bert_pallas_forward.1} parent=1 // pred_fallthru
      _
    // Predicated region
    $region42: #{bert_pallas_forward.1} parent=1 // pred_check
      _
    $region43: #{bert_pallas_forward.1} parent=1 // pred_check_branch
      %96 = sbr.rel (0) target = $region45
    $region44: #{bert_pallas_forward.1} parent=1 // pred_region
      _
    $region45: #{bert_pallas_forward.1} parent=1 // pred_fallthru
      _
    // Predicated region
    $region46: #{bert_pallas_forward.1} parent=1 // pred_check
      _
    $region47: #{bert_pallas_forward.1} parent=1 // pred_check_branch
      %98 = sbr.rel (0) target = $region49
    $region48: #{bert_pallas_forward.1} parent=1 // pred_region
      _
    $region49: #{bert_pallas_forward.1} parent=1 // pred_fallthru
      _
    // Predicated region
    $region50: #{bert_pallas_forward.1} parent=1 // pred_check
      _
    $region51: #{bert_pallas_forward.1} parent=1 // pred_check_branch
      %100 = sbr.rel (0) target = $region53
    $region52: #{bert_pallas_forward.1} parent=1 // pred_region
      _
    $region53: #{bert_pallas_forward.1} parent=1 // pred_fallthru
      _
    // Predicated region
    $region54: #{bert_pallas_forward.1} parent=1 // pred_check
      _
    $region55: #{bert_pallas_forward.1} parent=1 // pred_check_branch
      %102 = sbr.rel (0) target = $region57
    $region56: #{bert_pallas_forward.1} parent=1 // pred_region
      _
    $region57: #{bert_pallas_forward.1} parent=1 // pred_fallthru
      _
    // Predicated region
    $region58: #{bert_pallas_forward.1} parent=1 // pred_check
      _
    $region59: #{bert_pallas_forward.1} parent=1 // pred_check_branch
      %104 = sbr.rel (0) target = $region61
    $region60: #{bert_pallas_forward.1} parent=1 // pred_region
      _
    $region61: #{bert_pallas_forward.1} parent=1 // pred_fallthru
      _
    // Predicated region
    $region62: #{bert_pallas_forward.1} parent=1 // pred_check
      _
    $region63: #{bert_pallas_forward.1} parent=1 // pred_check_branch
      %106 = sbr.rel (0) target = $region65
    $region64: #{bert_pallas_forward.1} parent=1 // pred_region
      _
    $region65: #{bert_pallas_forward.1} parent=1 // pred_fallthru
      _
    // Predicated region
    $region66: #{bert_pallas_forward.1} parent=1 // pred_check
      _
    $region67: #{bert_pallas_forward.1} parent=1 // pred_check_branch
      %108 = sbr.rel (0) target = $region69
    $region68: #{bert_pallas_forward.1} parent=1 // pred_region
      _
    $region69: #{bert_pallas_forward.1} parent=1 // pred_fallthru
      _
    // Predicated region
    $region70: #{bert_pallas_forward.1} parent=1 // pred_check
      _
    $region71: #{bert_pallas_forward.1} parent=1 // pred_check_branch
      %110 = sbr.rel (0) target = $region73
    $region72: #{bert_pallas_forward.1} parent=1 // pred_region
      _
    $region73: #{bert_pallas_forward.1} parent=1 // pred_fallthru
      _
    // Predicated region
    $region74: #{bert_pallas_forward.1} parent=1 // pred_check
      _
    $region75: #{bert_pallas_forward.1} parent=1 // pred_check_branch
      %112 = sbr.rel (0) target = $region77
    $region76: #{bert_pallas_forward.1} parent=1 // pred_region
      _
    $region77: #{bert_pallas_forward.1} parent=1 // pred_fallthru
      _
    // Predicated region
    $region78: #{bert_pallas_forward.1} parent=1 // pred_check
      _
    $region79: #{bert_pallas_forward.1} parent=1 // pred_check_branch
      %114 = sbr.rel (0) target = $region81
    $region80: #{bert_pallas_forward.1} parent=1 // pred_region
      _
    $region81: #{bert_pallas_forward.1} parent=1 // pred_fallthru
      _
    // Predicated region
    $region82: #{bert_pallas_forward.1} parent=1 // pred_check
      _
    $region83: #{bert_pallas_forward.1} parent=1 // pred_check_branch
      %116 = sbr.rel (0) target = $region85
    $region84: #{bert_pallas_forward.1} parent=1 // pred_region
      _
    $region85: #{bert_pallas_forward.1} parent=1 // pred_fallthru
      _
    // Predicated region
    $region86: #{bert_pallas_forward.1} parent=1 // pred_check
      _
    $region87: #{bert_pallas_forward.1} parent=1 // pred_check_branch
      %118 = sbr.rel (0) target = $region89
    $region88: #{bert_pallas_forward.1} parent=1 // pred_region
      _
    $region89: #{bert_pallas_forward.1} parent=1 // pred_fallthru
      _
    // Predicated region
    $region90: #{bert_pallas_forward.1} parent=1 // pred_check
      _
    $region91: #{bert_pallas_forward.1} parent=1 // pred_check_branch
      %120 = sbr.rel (0) target = $region93
    $region92: #{bert_pallas_forward.1} parent=1 // pred_region
      _
    $region93: #{bert_pallas_forward.1} parent=1 // pred_fallthru
      _
    // Predicated region
    $region94: #{bert_pallas_forward.1} parent=1 // pred_check
      _
    $region95: #{bert_pallas_forward.1} parent=1 // pred_check_branch
      %122 = sbr.rel (0) target = $region97
    $region96: #{bert_pallas_forward.1} parent=1 // pred_region
      _
    $region97: #{bert_pallas_forward.1} parent=1 // pred_fallthru
      _
    // Predicated region
    $region98: #{bert_pallas_forward.1} parent=1 // pred_check
      _
    $region99: #{bert_pallas_forward.1} parent=1 // pred_check_branch
      %124 = sbr.rel (0) target = $region101
    $region100: #{bert_pallas_forward.1} parent=1 // pred_region
      _
    $region101: #{bert_pallas_forward.1} parent=1 // pred_fallthru
      _
    // Predicated region
    $region102: #{bert_pallas_forward.1} parent=1 // pred_check
      _
    $region103: #{bert_pallas_forward.1} parent=1 // pred_check_branch
      %126 = sbr.rel (0) target = $region105
    $region104: #{bert_pallas_forward.1} parent=1 // pred_region
      _
    $region105: #{bert_pallas_forward.1} parent=1 // pred_fallthru
      _
    // Predicated region
    $region106: #{bert_pallas_forward.1} parent=1 // pred_check
      _
    $region107: #{bert_pallas_forward.1} parent=1 // pred_check_branch
      %128 = sbr.rel (0) target = $region109
    $region108: #{bert_pallas_forward.1} parent=1 // pred_region
      _
    $region109: #{bert_pallas_forward.1} parent=1 // pred_fallthru
      _
    // Predicated region
    $region110: #{bert_pallas_forward.1} parent=1 // pred_check
      _
    $region111: #{bert_pallas_forward.1} parent=1 // pred_check_branch
      %130 = sbr.rel (0) target = $region113
    $region112: #{bert_pallas_forward.1} parent=1 // pred_region
      _
    $region113: #{bert_pallas_forward.1} parent=1 // pred_fallthru
      _
    // Predicated region
    $region114: #{bert_pallas_forward.1} parent=1 // pred_check
      _
    $region115: #{bert_pallas_forward.1} parent=1 // pred_check_branch
      %132 = sbr.rel (0) target = $region117
    $region116: #{bert_pallas_forward.1} parent=1 // pred_region
      _
    $region117: #{bert_pallas_forward.1} parent=1 // pred_fallthru
      _
    // Predicated region
    $region118: #{bert_pallas_forward.1} parent=1 // pred_check
      _
    $region119: #{bert_pallas_forward.1} parent=1 // pred_check_branch
      %134 = sbr.rel (0) target = $region121
    $region120: #{bert_pallas_forward.1} parent=1 // pred_region
      _
    $region121: #{bert_pallas_forward.1} parent=1 // pred_fallthru
      _
    // Predicated region
    $region122: #{bert_pallas_forward.1} parent=1 // pred_check
      _
    $region123: #{bert_pallas_forward.1} parent=1 // pred_check_branch
      %136 = sbr.rel (0) target = $region125
    $region124: #{bert_pallas_forward.1} parent=1 // pred_region
      _
    $region125: #{bert_pallas_forward.1} parent=1 // pred_fallthru
      _
    // Predicated region
    $region126: #{bert_pallas_forward.1} parent=1 // pred_check
      _
    $region127: #{bert_pallas_forward.1} parent=1 // pred_check_branch
      %138 = sbr.rel (0) target = $region129
    $region128: #{bert_pallas_forward.1} parent=1 // pred_region
      _
    $region129: #{bert_pallas_forward.1} parent=1 // pred_fallthru
      _
    // Predicated region
    $region130: #{bert_pallas_forward.1} parent=1 // pred_check
      _
    $region131: #{bert_pallas_forward.1} parent=1 // pred_check_branch
      %140 = sbr.rel (0) target = $region133
    $region132: #{bert_pallas_forward.1} parent=1 // pred_region
      _
    $region133: #{bert_pallas_forward.1} parent=1 // pred_fallthru
      _
    // Predicated region
    $region134: #{bert_pallas_forward.1} parent=1 // pred_check
      _
    $region135: #{bert_pallas_forward.1} parent=1 // pred_check_branch
      %142 = sbr.rel (0) target = $region137
    $region136: #{bert_pallas_forward.1} parent=1 // pred_region
      _
    $region137: #{bert_pallas_forward.1} parent=1 // pred_fallthru
      _
    %v143 = vld [vmem:[%s1] sm:$0xff]
    %v144 = vld [vmem:[%s1 + $0x8] sm:$0xff]
    %v145 = vld [vmem:[%s3] sm:$0xff]
    %v146 = vld [vmem:[%s3 + $0x8] sm:$0xff]
    %v147 = vld [vmem:[%s3 + $0x10] sm:$0xff]
    %v148 = vld [vmem:[%s3 + $0x18] sm:$0xff]
    %v149 = vld [vmem:[%s3 + $0x20] sm:$0xff]
    %v150 = vld [vmem:[%s3 + $0x28] sm:$0xff]
    %v151 = vld [vmem:[%s3 + $0x30] sm:$0xff]
    %v152 = vld [vmem:[%s3 + $0x38] sm:$0xff]
    %v153 = vld [vmem:[%s3 + $0x40] sm:$0xff]
    %v154 = vld [vmem:[%s3 + $0x48] sm:$0xff]
    %vm155 = vcmask 654336
    %v157 = vsel %vm155, %v143, 0
    %v160 = vsel %vm155, %v144, 0
    %162 = vmatprep.subr.mxu0 0.0
    %163 = vmatpush1.msra.mxu0 %v145
    %164 = vmatprep.subr.mxu0 0.0
    %165 = vmatpush1.msra.mxu0 %v146
    %166 = vmatprep.subr.mxu0 0.0
    %167 = vmatpush1.msra.mxu0 %v147
    %168 = vmatprep.subr.mxu0 0.0
    %169 = vmatpush1.msra.mxu0 %v148
    %170 = vmatprep.subr.mxu0 0.0
    %171 = vmatpush1.msra.mxu0 %v149
    %172 = vmatprep.subr.mxu0 0.0
    %173 = vmatpush1.msra.mxu0 %v150
    %174 = vmatprep.subr.mxu0 0.0
    %175 = vmatpush1.msra.mxu0 %v151
    %176 = vmatprep.subr.mxu0 0.0
    %177 = vmatpush1.msra.mxu0 %v152
    %178 = vmatprep.subr.mxu0 0.0
    %179 = vmatpush1.msra.mxu0 %v153
    %180 = vmatprep.subr.mxu0 0.0
    %181 = vmatpush1.msra.mxu0 %v154
    %182 = vmatprep.subr.mxu0 0.0
    %183 = vmatpush1.msra.mxu0 0.0
    %184 = vmatprep.subr.mxu0 0.0
    %185 = vmatpush1.msra.mxu0 0.0
    %186 = vmatprep.subr.mxu0 0.0
    %187 = vmatpush1.msra.mxu0 0.0
    %188 = vmatprep.subr.mxu0 0.0
    %189 = vmatpush1.msra.mxu0 0.0
    %190 = vmatprep.subr.mxu0 0.0
    %191 = vmatpush1.msra.mxu0 0.0
    %192 = vmatprep.subr.mxu0 0.0
    %193 = vmatpush1.msra.mxu0 0.0
    %194 = vmatprep.subr.mxu0 0.0
    %195 = vmatpush1.msra.mxu0 0.0
    %196 = vmatprep.subr.mxu0 0.0
    %197 = vmatpush1.msra.mxu0 0.0
    %198 = vmatprep.subr.mxu0 0.0
    %199 = vmatpush1.msra.mxu0 0.0
    %200 = vmatprep.subr.mxu0 0.0
    %201 = vmatpush1.msra.mxu0 0.0
    %202 = vmatprep.subr.mxu0 0.0
    %203 = vmatpush1.msra.mxu0 0.0
    %204 = vmatprep.subr.mxu0 0.0
    %205 = vmatpush1.msra.mxu0 0.0
    %206 = vmatprep.subr.mxu0 0.0
    %207 = vmatpush1.msra.mxu0 0.0
    %208 = vmatprep.subr.mxu0 0.0
    %209 = vmatpush1.msra.mxu0 0.0
    %210 = vmatprep.subr.mxu0 0.0
    %211 = vmatpush1.msra.mxu0 0.0
    %212 = vmatprep.subr.mxu0 0.0
    %213 = vmatpush1.msra.mxu0 0.0
    %214 = vmatprep.subr.mxu0 0.0
    %215 = vmatpush1.msra.mxu0 0.0
    %216 = vmatprep.subr.mxu0 0.0
    %217 = vmatpush1.msra.mxu0 0.0
    %218 = vmatprep.subr.mxu0 0.0
    %219 = vmatpush1.msra.mxu0 0.0
    %220 = vmatprep.subr.mxu0 0.0
    %221 = vmatpush1.msra.mxu0 0.0
    %222 = vmatprep.subr.mxu0 0.0
    %223 = vmatpush1.msra.mxu0 0.0
    %224 = vmatprep.subr.mxu0 0.0
    %225 = vmatpush1.msra.mxu0 0.0
    %226 = vmatprep.mubr.f32.mxu0 0.0
    %227 = vmatmul.mubr.f32.gmra.mrb[0].mxu0 %v157
    %v228 = vpop.f32.mrb[0].mxu0
    %v229 = vadd.f32 0.0, %v228
    %v230 = vpop.f32.mrb[0].mxu0
    %231 = vmatprep.mubr.f32.mxu0 0.0
    %232 = vmatmul.mubr.f32.gmra.mrb[0].mxu0 %v160
    %v233 = vpop.f32.mrb[0].mxu0
    %v234 = vadd.f32 0.0, %v233
    %v235 = vpop.f32.mrb[0].mxu0
    %236 = vdwg.mxu0
    %v237 = vld [vmem:[%s5] sm:$0x1]
    %v238 = vld [vmem:[%s7] sm:$0x1]
    %vm239 = vcmask 261120
    %v240 = vsel %vm239, %v229, 0.0
    %241 = vadd.xlane.f32.xlu0 %v240
    %v242 = vpop.xlane.xlu0 %241
    %v243 = vsel %vm239, %v234, 0.0
    %244 = vadd.xlane.f32.xlu0 %v243
    %v245 = vpop.xlane.xlu0 %244
    %v246 = vrcp.pop 32.0
    %v247 = vmul.f32 %v242, %v246
    %v248 = vmul.f32 %v245, %v246
    %v249 = vsub.f32 %v229, %v247
    %v250 = vsub.f32 %v234, %v248
    %v251 = vmul.f32 %v249, %v249
    %v252 = vmul.f32 %v250, %v250
    %v253 = vsel %vm239, %v251, 0.0
    %254 = vadd.xlane.f32.xlu0 %v253
    %v255 = vpop.xlane.xlu0 %254
    %v256 = vsel %vm239, %v252, 0.0
    %257 = vadd.xlane.f32.xlu0 %v256
    %v258 = vpop.xlane.xlu0 %257
    %v259 = vmul.f32 %v255, %v246
    %v260 = vmul.f32 %v258, %v246
    %v261 = vadd.f32 %v259, 1e-12
    %v262 = vadd.f32 %v260, 1e-12
    %v263 = vrsqrt.pop %v261
    %v264 = vrsqrt.pop %v262
    %v265 = vmul.f32 %v249, %v263
    %v266 = vmul.f32 %v250, %v264
    %v268 = vlaneseq
    %v269 = vshrl.u32 %v268, 7
    %v270 = vsub.s32 0, %v269
    %v271 = vrot.slane %v237, %v270
    %v273 = vmul.f32 %v265, %v271
    %v274 = vmul.f32 %v266, %v271
    %v276 = vlaneseq
    %v277 = vshrl.u32 %v276, 7
    %v278 = vsub.s32 0, %v277
    %v279 = vrot.slane %v238, %v278
    %v281 = vadd.f32 %v273, %v279
    %v282 = vadd.f32 %v274, %v279
    %v283 = vld [vmem:[%s9] sm:$0xff]
    %v284 = vld [vmem:[%s9 + $0x8] sm:$0xff]
    %v285 = vld [vmem:[%s9 + $0x10] sm:$0xff]
    %v286 = vld [vmem:[%s9 + $0x18] sm:$0xff]
    %v287 = vld [vmem:[%s9 + $0x20] sm:$0xff]
    %v288 = vld [vmem:[%s9 + $0x28] sm:$0xff]
    %v289 = vld [vmem:[%s9 + $0x30] sm:$0xff]
    %v290 = vld [vmem:[%s9 + $0x38] sm:$0xff]
    %v291 = vld [vmem:[%s13] sm:$0xff]
    %v292 = vld [vmem:[%s13 + $0x8] sm:$0xff]
    %v293 = vld [vmem:[%s13 + $0x10] sm:$0xff]
    %v294 = vld [vmem:[%s13 + $0x18] sm:$0xff]
    %v295 = vld [vmem:[%s15] sm:$0x1]
    %v297 = vlaneseq
    %v298 = vshrl.u32 %v297, 7
    %v299 = vsub.s32 0, %v298
    %v300 = vrot.slane %v295, %v299
    %v303 = vsel %vm239, %v281, 0
    %v306 = vsel %vm239, %v282, 0
    %308 = vmatprep.subr.mxu0 0.0
    %309 = vmatpush1.msra.mxu0 %v291
    %310 = vmatprep.subr.mxu0 0.0
    %311 = vmatpush1.msra.mxu0 %v292
    %312 = vmatprep.subr.mxu0 0.0
    %313 = vmatpush1.msra.mxu0 %v293
    %314 = vmatprep.subr.mxu0 0.0
    %315 = vmatpush1.msra.mxu0 %v294
    %316 = vmatprep.subr.mxu0 0.0
    %317 = vmatpush1.msra.mxu0 0.0
    %318 = vmatprep.subr.mxu0 0.0
    %319 = vmatpush1.msra.mxu0 0.0
    %320 = vmatprep.subr.mxu0 0.0
    %321 = vmatpush1.msra.mxu0 0.0
    %322 = vmatprep.subr.mxu0 0.0
    %323 = vmatpush1.msra.mxu0 0.0
    %324 = vmatprep.subr.mxu0 0.0
    %325 = vmatpush1.msra.mxu0 0.0
    %326 = vmatprep.subr.mxu0 0.0
    %327 = vmatpush1.msra.mxu0 0.0
    %328 = vmatprep.subr.mxu0 0.0
    %329 = vmatpush1.msra.mxu0 0.0
    %330 = vmatprep.subr.mxu0 0.0
    %331 = vmatpush1.msra.mxu0 0.0
    %332 = vmatprep.subr.mxu0 0.0
    %333 = vmatpush1.msra.mxu0 0.0
    %334 = vmatprep.subr.mxu0 0.0
    %335 = vmatpush1.msra.mxu0 0.0
    %336 = vmatprep.subr.mxu0 0.0
    %337 = vmatpush1.msra.mxu0 0.0
    %338 = vmatprep.subr.mxu0 0.0
    %339 = vmatpush1.msra.mxu0 0.0
    %340 = vmatprep.subr.mxu0 0.0
    %341 = vmatpush1.msra.mxu0 0.0
    %342 = vmatprep.subr.mxu0 0.0
    %343 = vmatpush1.msra.mxu0 0.0
    %344 = vmatprep.subr.mxu0 0.0
    %345 = vmatpush1.msra.mxu0 0.0
    %346 = vmatprep.subr.mxu0 0.0
    %347 = vmatpush1.msra.mxu0 0.0
    %348 = vmatprep.subr.mxu0 0.0
    %349 = vmatpush1.msra.mxu0 0.0
    %350 = vmatprep.subr.mxu0 0.0
    %351 = vmatpush1.msra.mxu0 0.0
    %352 = vmatprep.subr.mxu0 0.0
    %353 = vmatpush1.msra.mxu0 0.0
    %354 = vmatprep.subr.mxu0 0.0
    %355 = vmatpush1.msra.mxu0 0.0
    %356 = vmatprep.subr.mxu0 0.0
    %357 = vmatpush1.msra.mxu0 0.0
    %358 = vmatprep.subr.mxu0 0.0
    %359 = vmatpush1.msra.mxu0 0.0
    %360 = vmatprep.subr.mxu0 0.0
    %361 = vmatpush1.msra.mxu0 0.0
    %362 = vmatprep.subr.mxu0 0.0
    %363 = vmatpush1.msra.mxu0 0.0
    %364 = vmatprep.subr.mxu0 0.0
    %365 = vmatpush1.msra.mxu0 0.0
    %366 = vmatprep.subr.mxu0 0.0
    %367 = vmatpush1.msra.mxu0 0.0
    %368 = vmatprep.subr.mxu0 0.0
    %369 = vmatpush1.msra.mxu0 0.0
    %370 = vmatprep.subr.mxu0 0.0
    %371 = vmatpush1.msra.mxu0 0.0
    %372 = vmatprep.mubr.f32.mxu0 0.0
    %373 = vmatmul.mubr.f32.gmra.mrb[0].mxu0 %v303
    %v374 = vpop.f32.mrb[0].mxu0
    %v375 = vadd.f32 %v300, %v374
    %v376 = vpop.f32.mrb[0].mxu0
    %377 = vmatprep.mubr.f32.mxu0 0.0
    %378 = vmatmul.mubr.f32.gmra.mrb[0].mxu0 %v306
    %v379 = vpop.f32.mrb[0].mxu0
    %v380 = vadd.f32 %v300, %v379
    %v381 = vpop.f32.mrb[0].mxu0
    %382 = vdwg.mxu0
    %385 = vrot.lane.b32.xlu0 %v375, 120
    %v386 = vpop.permute.xlu0 %385
    %387 = vrot.lane.b32.xlu0 %v380, 120
    %v388 = vpop.permute.xlu0 %387
    %389 = vrot.lane.b32.xlu0 %v375, 112
    %v390 = vpop.permute.xlu0 %389
    %391 = vrot.lane.b32.xlu0 %v380, 112
    %v392 = vpop.permute.xlu0 %391
    %393 = vrot.lane.b32.xlu0 %v375, 104
    %v394 = vpop.permute.xlu0 %393
    %395 = vrot.lane.b32.xlu0 %v380, 104
    %v396 = vpop.permute.xlu0 %395
    %397 = vrot.lane.b32.xlu0 %v375, 96
    %v398 = vpop.permute.xlu0 %397
    %399 = vrot.lane.b32.xlu0 %v380, 96
    %v400 = vpop.permute.xlu0 %399
    %401 = vrot.lane.b32.xlu0 %v386, 96
    %v402 = vpop.permute.xlu0 %401
    %403 = vrot.lane.b32.xlu0 %v388, 96
    %v404 = vpop.permute.xlu0 %403
    %405 = vrot.lane.b32.xlu0 %v390, 96
    %v406 = vpop.permute.xlu0 %405
    %407 = vrot.lane.b32.xlu0 %v392, 96
    %v408 = vpop.permute.xlu0 %407
    %409 = vrot.lane.b32.xlu0 %v394, 96
    %v410 = vpop.permute.xlu0 %409
    %411 = vrot.lane.b32.xlu0 %v396, 96
    %v412 = vpop.permute.xlu0 %411
    %vm413 = vcmask 64512
    %v414 = vsel %vm413, %v375, 0
    %v416 = vsel %vm413, %v380, 0
    %v418 = vsel %vm413, %v386, 0
    %v420 = vsel %vm413, %v388, 0
    %v422 = vsel %vm413, %v390, 0
    %v424 = vsel %vm413, %v392, 0
    %v426 = vsel %vm413, %v394, 0
    %v428 = vsel %vm413, %v396, 0
    %v430 = vsel %vm413, %v398, 0
    %v432 = vsel %vm413, %v400, 0
    %v434 = vsel %vm413, %v402, 0
    %v436 = vsel %vm413, %v404, 0
    %v438 = vsel %vm413, %v406, 0
    %v440 = vsel %vm413, %v408, 0
    %v442 = vsel %vm413, %v410, 0
    %v444 = vsel %vm413, %v412, 0
    %446 = vmatprep.subr.mxu0 0.0
    %447 = vmatpush1.xpose.msra.mxu0 %v430
    %448 = vmatprep.subr.mxu0 0.0
    %449 = vmatpush1.xpose.msra.mxu0 %v432
    %450 = vmatprep.subr.mxu0 0.0
    %451 = vmatpush1.xpose.msra.mxu0 %v434
    %452 = vmatprep.subr.mxu0 0.0
    %453 = vmatpush1.xpose.msra.mxu0 %v436
    %454 = vmatprep.subr.mxu0 0.0
    %455 = vmatpush1.xpose.msra.mxu0 %v438
    %456 = vmatprep.subr.mxu0 0.0
    %457 = vmatpush1.xpose.msra.mxu0 %v440
    %458 = vmatprep.subr.mxu0 0.0
    %459 = vmatpush1.xpose.msra.mxu0 %v442
    %460 = vmatprep.subr.mxu0 0.0
    %461 = vmatpush1.xpose.msra.mxu0 %v444
    %462 = vmatprep.subr.mxu0 0.0
    %463 = vmatpush1.xpose.msra.mxu0 0.0
    %464 = vmatprep.subr.mxu0 0.0
    %465 = vmatpush1.xpose.msra.mxu0 0.0
    %466 = vmatprep.subr.mxu0 0.0
    %467 = vmatpush1.xpose.msra.mxu0 0.0
    %468 = vmatprep.subr.mxu0 0.0
    %469 = vmatpush1.xpose.msra.mxu0 0.0
    %470 = vmatprep.subr.mxu0 0.0
    %471 = vmatpush1.xpose.msra.mxu0 0.0
    %472 = vmatprep.subr.mxu0 0.0
    %473 = vmatpush1.xpose.msra.mxu0 0.0
    %474 = vmatprep.subr.mxu0 0.0
    %475 = vmatpush1.xpose.msra.mxu0 0.0
    %476 = vmatprep.subr.mxu0 0.0
    %477 = vmatpush1.xpose.msra.mxu0 0.0
    %478 = vmatprep.subr.mxu0 0.0
    %479 = vmatpush1.xpose.msra.mxu0 0.0
    %480 = vmatprep.subr.mxu0 0.0
    %481 = vmatpush1.xpose.msra.mxu0 0.0
    %482 = vmatprep.subr.mxu0 0.0
    %483 = vmatpush1.xpose.msra.mxu0 0.0
    %484 = vmatprep.subr.mxu0 0.0
    %485 = vmatpush1.xpose.msra.mxu0 0.0
    %486 = vmatprep.subr.mxu0 0.0
    %487 = vmatpush1.xpose.msra.mxu0 0.0
    %488 = vmatprep.subr.mxu0 0.0
    %489 = vmatpush1.xpose.msra.mxu0 0.0
    %490 = vmatprep.subr.mxu0 0.0
    %491 = vmatpush1.xpose.msra.mxu0 0.0
    %492 = vmatprep.subr.mxu0 0.0
    %493 = vmatpush1.xpose.msra.mxu0 0.0
    %494 = vmatprep.subr.mxu0 0.0
    %495 = vmatpush1.xpose.msra.mxu0 0.0
    %496 = vmatprep.subr.mxu0 0.0
    %497 = vmatpush1.xpose.msra.mxu0 0.0
    %498 = vmatprep.subr.mxu0 0.0
    %499 = vmatpush1.xpose.msra.mxu0 0.0
    %500 = vmatprep.subr.mxu0 0.0
    %501 = vmatpush1.xpose.msra.mxu0 0.0
    %502 = vmatprep.subr.mxu0 0.0
    %503 = vmatpush1.xpose.msra.mxu0 0.0
    %504 = vmatprep.subr.mxu0 0.0
    %505 = vmatpush1.xpose.msra.mxu0 0.0
    %506 = vmatprep.subr.mxu0 0.0
    %507 = vmatpush1.xpose.msra.mxu0 0.0
    %508 = vmatprep.subr.mxu0 0.0
    %509 = vmatpush1.xpose.msra.mxu0 0.0
    %510 = vmatprep.mubr.f32.mxu0 0.0
    %511 = vmatmul.mubr.f32.gmra.mrb[0].mxu0 %v414
    %v512 = vpop.f32.mrb[0].mxu0
    %v513 = vadd.f32 %v283, %v512
    %v514 = vpop.f32.mrb[0].mxu0
    %515 = vmatprep.mubr.f32.mxu0 0.0
    %516 = vmatmul.mubr.f32.gmra.mrb[0].mxu0 %v416
    %v517 = vpop.f32.mrb[0].mxu0
    %v518 = vadd.f32 %v284, %v517
    %v519 = vpop.f32.mrb[0].mxu0
    %520 = vmatprep.mubr.f32.mxu0 0.0
    %521 = vmatmul.mubr.f32.gmra.mrb[0].mxu0 %v418
    %v522 = vpop.f32.mrb[0].mxu0
    %v523 = vadd.f32 %v285, %v522
    %v524 = vpop.f32.mrb[0].mxu0
    %525 = vmatprep.mubr.f32.mxu0 0.0
    %526 = vmatmul.mubr.f32.gmra.mrb[0].mxu0 %v420
    %v527 = vpop.f32.mrb[0].mxu0
    %v528 = vadd.f32 %v286, %v527
    %v529 = vpop.f32.mrb[0].mxu0
    %530 = vmatprep.mubr.f32.mxu0 0.0
    %531 = vmatmul.mubr.f32.gmra.mrb[0].mxu0 %v422
    %v532 = vpop.f32.mrb[0].mxu0
    %v533 = vadd.f32 %v287, %v532
    %v534 = vpop.f32.mrb[0].mxu0
    %535 = vmatprep.mubr.f32.mxu0 0.0
    %536 = vmatmul.mubr.f32.gmra.mrb[0].mxu0 %v424
    %v537 = vpop.f32.mrb[0].mxu0
    %v538 = vadd.f32 %v288, %v537
    %v539 = vpop.f32.mrb[0].mxu0
    %540 = vmatprep.mubr.f32.mxu0 0.0
    %541 = vmatmul.mubr.f32.gmra.mrb[0].mxu0 %v426
    %v542 = vpop.f32.mrb[0].mxu0
    %v543 = vadd.f32 %v289, %v542
    %v544 = vpop.f32.mrb[0].mxu0
    %545 = vmatprep.mubr.f32.mxu0 0.0
    %546 = vmatmul.mubr.f32.gmra.mrb[0].mxu0 %v428
    %v547 = vpop.f32.mrb[0].mxu0
    %v548 = vadd.f32 %v290, %v547
    %v549 = vpop.f32.mrb[0].mxu0
    %550 = vdwg.mxu0
    %vm551 = vcmask 523264
    %v552 = vsel %vm551, %v513, -inf
    %553 = vmax.xlane.f32.xlu0 %v552
    %v554 = vpop.xlane.xlu0 %553
    %v555 = vsel %vm551, %v518, -inf
    %556 = vmax.xlane.f32.xlu0 %v555
    %v557 = vpop.xlane.xlu0 %556
    %v558 = vsel %vm551, %v523, -inf
    %559 = vmax.xlane.f32.xlu0 %v558
    %v560 = vpop.xlane.xlu0 %559
    %v561 = vsel %vm551, %v528, -inf
    %562 = vmax.xlane.f32.xlu0 %v561
    %v563 = vpop.xlane.xlu0 %562
    %v564 = vsel %vm551, %v533, -inf
    %565 = vmax.xlane.f32.xlu0 %v564
    %v566 = vpop.xlane.xlu0 %565
    %v567 = vsel %vm551, %v538, -inf
    %568 = vmax.xlane.f32.xlu0 %v567
    %v569 = vpop.xlane.xlu0 %568
    %v570 = vsel %vm551, %v543, -inf
    %571 = vmax.xlane.f32.xlu0 %v570
    %v572 = vpop.xlane.xlu0 %571
    %v573 = vsel %vm551, %v548, -inf
    %574 = vmax.xlane.f32.xlu0 %v573
    %v575 = vpop.xlane.xlu0 %574
    %v576 = vsub.f32 %v513, %v554
    %v577 = vsub.f32 %v518, %v557
    %v578 = vsub.f32 %v523, %v560
    %v579 = vsub.f32 %v528, %v563
    %v580 = vsub.f32 %v533, %v566
    %v581 = vsub.f32 %v538, %v569
    %v582 = vsub.f32 %v543, %v572
    %v583 = vsub.f32 %v548, %v575
    %v584 = vmul.f32 %v576, 1.442695
    %v585 = vpow.pop %v584
    %v586 = vmul.f32 %v577, 1.442695
    %v587 = vpow.pop %v586
    %v588 = vmul.f32 %v578, 1.442695
    %v589 = vpow.pop %v588
    %v590 = vmul.f32 %v579, 1.442695
    %v591 = vpow.pop %v590
    %v592 = vmul.f32 %v580, 1.442695
    %v593 = vpow.pop %v592
    %v594 = vmul.f32 %v581, 1.442695
    %v595 = vpow.pop %v594
    %v596 = vmul.f32 %v582, 1.442695
    %v597 = vpow.pop %v596
    %v598 = vmul.f32 %v583, 1.442695
    %v599 = vpow.pop %v598
    %v600 = vsel %vm551, %v585, 0.0
    %601 = vadd.xlane.f32.xlu0 %v600
    %v602 = vpop.xlane.xlu0 %601
    %v603 = vsel %vm551, %v587, 0.0
    %604 = vadd.xlane.f32.xlu0 %v603
    %v605 = vpop.xlane.xlu0 %604
    %v606 = vsel %vm551, %v589, 0.0
    %607 = vadd.xlane.f32.xlu0 %v606
    %v608 = vpop.xlane.xlu0 %607
    %v609 = vsel %vm551, %v591, 0.0
    %610 = vadd.xlane.f32.xlu0 %v609
    %v611 = vpop.xlane.xlu0 %610
    %v612 = vsel %vm551, %v593, 0.0
    %613 = vadd.xlane.f32.xlu0 %v612
    %v614 = vpop.xlane.xlu0 %613
    %v615 = vsel %vm551, %v595, 0.0
    %616 = vadd.xlane.f32.xlu0 %v615
    %v617 = vpop.xlane.xlu0 %616
    %v618 = vsel %vm551, %v597, 0.0
    %619 = vadd.xlane.f32.xlu0 %v618
    %v620 = vpop.xlane.xlu0 %619
    %v621 = vsel %vm551, %v599, 0.0
    %622 = vadd.xlane.f32.xlu0 %v621
    %v623 = vpop.xlane.xlu0 %622
    %v624 = vrcp.pop %v602
    %v625 = vrcp.pop %v605
    %v626 = vrcp.pop %v608
    %v627 = vrcp.pop %v611
    %v628 = vrcp.pop %v614
    %v629 = vrcp.pop %v617
    %v630 = vrcp.pop %v620
    %v631 = vrcp.pop %v623
    %v632 = vmul.f32 %v585, %v624
    %v633 = vmul.f32 %v587, %v625
    %v634 = vmul.f32 %v589, %v626
    %v635 = vmul.f32 %v591, %v627
    %v636 = vmul.f32 %v593, %v628
    %v637 = vmul.f32 %v595, %v629
    %v638 = vmul.f32 %v597, %v630
    %v639 = vmul.f32 %v599, %v631
    %640 = vrot.lane.b32.xlu0 %v375, 64
    %v641 = vpop.permute.xlu0 %640
    %642 = vrot.lane.b32.xlu0 %v380, 64
    %v643 = vpop.permute.xlu0 %642
    %644 = vrot.lane.b32.xlu0 %v386, 64
    %v645 = vpop.permute.xlu0 %644
    %646 = vrot.lane.b32.xlu0 %v388, 64
    %v647 = vpop.permute.xlu0 %646
    %648 = vrot.lane.b32.xlu0 %v390, 64
    %v649 = vpop.permute.xlu0 %648
    %650 = vrot.lane.b32.xlu0 %v392, 64
    %v651 = vpop.permute.xlu0 %650
    %652 = vrot.lane.b32.xlu0 %v394, 64
    %v653 = vpop.permute.xlu0 %652
    %654 = vrot.lane.b32.xlu0 %v396, 64
    %v655 = vpop.permute.xlu0 %654
    %v665 = vsel %vm551, %v632, 0
    %v668 = vsel %vm551, %v633, 0
    %v671 = vsel %vm551, %v634, 0
    %v674 = vsel %vm551, %v635, 0
    %v677 = vsel %vm551, %v636, 0
    %v680 = vsel %vm551, %v637, 0
    %v683 = vsel %vm551, %v638, 0
    %v686 = vsel %vm551, %v639, 0
    %688 = vmatprep.subr.mxu0 0.0
    %689 = vmatpush1.msra.mxu0 %v641
    %690 = vmatprep.subr.mxu0 0.0
    %691 = vmatpush1.msra.mxu0 %v643
    %692 = vmatprep.subr.mxu0 0.0
    %693 = vmatpush1.msra.mxu0 %v645
    %694 = vmatprep.subr.mxu0 0.0
    %695 = vmatpush1.msra.mxu0 %v647
    %696 = vmatprep.subr.mxu0 0.0
    %697 = vmatpush1.msra.mxu0 %v649
    %698 = vmatprep.subr.mxu0 0.0
    %699 = vmatpush1.msra.mxu0 %v651
    %700 = vmatprep.subr.mxu0 0.0
    %701 = vmatpush1.msra.mxu0 %v653
    %702 = vmatprep.subr.mxu0 0.0
    %703 = vmatpush1.msra.mxu0 %v655
    %704 = vmatprep.subr.mxu0 0.0
    %705 = vmatpush1.msra.mxu0 0.0
    %706 = vmatprep.subr.mxu0 0.0
    %707 = vmatpush1.msra.mxu0 0.0
    %708 = vmatprep.subr.mxu0 0.0
    %709 = vmatpush1.msra.mxu0 0.0
    %710 = vmatprep.subr.mxu0 0.0
    %711 = vmatpush1.msra.mxu0 0.0
    %712 = vmatprep.subr.mxu0 0.0
    %713 = vmatpush1.msra.mxu0 0.0
    %714 = vmatprep.subr.mxu0 0.0
    %715 = vmatpush1.msra.mxu0 0.0
    %716 = vmatprep.subr.mxu0 0.0
    %717 = vmatpush1.msra.mxu0 0.0
    %718 = vmatprep.subr.mxu0 0.0
    %719 = vmatpush1.msra.mxu0 0.0
    %720 = vmatprep.subr.mxu0 0.0
    %721 = vmatpush1.msra.mxu0 0.0
    %722 = vmatprep.subr.mxu0 0.0
    %723 = vmatpush1.msra.mxu0 0.0
    %724 = vmatprep.subr.mxu0 0.0
    %725 = vmatpush1.msra.mxu0 0.0
    %726 = vmatprep.subr.mxu0 0.0
    %727 = vmatpush1.msra.mxu0 0.0
    %728 = vmatprep.subr.mxu0 0.0
    %729 = vmatpush1.msra.mxu0 0.0
    %730 = vmatprep.subr.mxu0 0.0
    %731 = vmatpush1.msra.mxu0 0.0
    %732 = vmatprep.subr.mxu0 0.0
    %733 = vmatpush1.msra.mxu0 0.0
    %734 = vmatprep.subr.mxu0 0.0
    %735 = vmatpush1.msra.mxu0 0.0
    %736 = vmatprep.subr.mxu0 0.0
    %737 = vmatpush1.msra.mxu0 0.0
    %738 = vmatprep.subr.mxu0 0.0
    %739 = vmatpush1.msra.mxu0 0.0
    %740 = vmatprep.subr.mxu0 0.0
    %741 = vmatpush1.msra.mxu0 0.0
    %742 = vmatprep.subr.mxu0 0.0
    %743 = vmatpush1.msra.mxu0 0.0
    %744 = vmatprep.subr.mxu0 0.0
    %745 = vmatpush1.msra.mxu0 0.0
    %746 = vmatprep.subr.mxu0 0.0
    %747 = vmatpush1.msra.mxu0 0.0
    %748 = vmatprep.subr.mxu0 0.0
    %749 = vmatpush1.msra.mxu0 0.0
    %750 = vmatprep.subr.mxu0 0.0
    %751 = vmatpush1.msra.mxu0 0.0
    %752 = vmatprep.mubr.f32.mxu0 0.0
    %753 = vmatmul.mubr.f32.gmra.mrb[0].mxu0 %v665
    %v754 = vpop.f32.mrb[0].mxu0
    %v755 = vadd.f32 0.0, %v754
    %v756 = vpop.f32.mrb[0].mxu0
    %757 = vmatprep.mubr.f32.mxu0 0.0
    %758 = vmatmul.mubr.f32.gmra.mrb[0].mxu0 %v668
    %v759 = vpop.f32.mrb[0].mxu0
    %v760 = vadd.f32 0.0, %v759
    %v761 = vpop.f32.mrb[0].mxu0
    %762 = vmatprep.mubr.f32.mxu0 0.0
    %763 = vmatmul.mubr.f32.gmra.mrb[0].mxu0 %v671
    %v764 = vpop.f32.mrb[0].mxu0
    %v765 = vadd.f32 0.0, %v764
    %v766 = vpop.f32.mrb[0].mxu0
    %767 = vmatprep.mubr.f32.mxu0 0.0
    %768 = vmatmul.mubr.f32.gmra.mrb[0].mxu0 %v674
    %v769 = vpop.f32.mrb[0].mxu0
    %v770 = vadd.f32 0.0, %v769
    %v771 = vpop.f32.mrb[0].mxu0
    %772 = vmatprep.mubr.f32.mxu0 0.0
    %773 = vmatmul.mubr.f32.gmra.mrb[0].mxu0 %v677
    %v774 = vpop.f32.mrb[0].mxu0
    %v775 = vadd.f32 0.0, %v774
    %v776 = vpop.f32.mrb[0].mxu0
    %777 = vmatprep.mubr.f32.mxu0 0.0
    %778 = vmatmul.mubr.f32.gmra.mrb[0].mxu0 %v680
    %v779 = vpop.f32.mrb[0].mxu0
    %v780 = vadd.f32 0.0, %v779
    %v781 = vpop.f32.mrb[0].mxu0
    %782 = vmatprep.mubr.f32.mxu0 0.0
    %783 = vmatmul.mubr.f32.gmra.mrb[0].mxu0 %v683
    %v784 = vpop.f32.mrb[0].mxu0
    %v785 = vadd.f32 0.0, %v784
    %v786 = vpop.f32.mrb[0].mxu0
    %787 = vmatprep.mubr.f32.mxu0 0.0
    %788 = vmatmul.mubr.f32.gmra.mrb[0].mxu0 %v686
    %v789 = vpop.f32.mrb[0].mxu0
    %v790 = vadd.f32 0.0, %v789
    %v791 = vpop.f32.mrb[0].mxu0
    %792 = vdwg.mxu0
    %795 = vrot.lane.b32.xlu0 %v765, 8
    %v796 = vpop.permute.xlu0 %795
    %797 = vrot.lane.b32.xlu0 %v770, 8
    %v798 = vpop.permute.xlu0 %797
    %803 = vrot.lane.b32.xlu0 %v775, 16
    %v804 = vpop.permute.xlu0 %803
    %805 = vrot.lane.b32.xlu0 %v780, 16
    %v806 = vpop.permute.xlu0 %805
    %811 = vrot.lane.b32.xlu0 %v785, 24
    %v812 = vpop.permute.xlu0 %811
    %813 = vrot.lane.b32.xlu0 %v790, 24
    %v814 = vpop.permute.xlu0 %813
    %v817 = vsel %vm413, %v755, %v796
    %v818 = vsel %vm413, %v760, %v798
    %vm819 = vcmask 130048
    %v820 = vsel %vm819, %v817, %v804
    %v821 = vsel %vm819, %v818, %v806
    %vm822 = vcmask 195584
    %v823 = vsel %vm822, %v820, %v812
    %v824 = vsel %vm822, %v821, %v814
    %v825 = vld [vmem:[%s17] sm:$0xff]
    %v826 = vld [vmem:[%s17 + $0x8] sm:$0xff]
    %v827 = vld [vmem:[%s17 + $0x10] sm:$0xff]
    %v828 = vld [vmem:[%s17 + $0x18] sm:$0xff]
    %v829 = vld [vmem:[%s19] sm:$0x1]
    %v831 = vlaneseq
    %v832 = vshrl.u32 %v831, 7
    %v833 = vsub.s32 0, %v832
    %v834 = vrot.slane %v829, %v833
    %v837 = vsel %vm239, %v823, 0
    %v840 = vsel %vm239, %v824, 0
    %842 = vmatprep.subr.mxu0 0.0
    %843 = vmatpush1.msra.mxu0 %v825
    %844 = vmatprep.subr.mxu0 0.0
    %845 = vmatpush1.msra.mxu0 %v826
    %846 = vmatprep.subr.mxu0 0.0
    %847 = vmatpush1.msra.mxu0 %v827
    %848 = vmatprep.subr.mxu0 0.0
    %849 = vmatpush1.msra.mxu0 %v828
    %850 = vmatprep.subr.mxu0 0.0
    %851 = vmatpush1.msra.mxu0 0.0
    %852 = vmatprep.subr.mxu0 0.0
    %853 = vmatpush1.msra.mxu0 0.0
    %854 = vmatprep.subr.mxu0 0.0
    %855 = vmatpush1.msra.mxu0 0.0
    %856 = vmatprep.subr.mxu0 0.0
    %857 = vmatpush1.msra.mxu0 0.0
    %858 = vmatprep.subr.mxu0 0.0
    %859 = vmatpush1.msra.mxu0 0.0
    %860 = vmatprep.subr.mxu0 0.0
    %861 = vmatpush1.msra.mxu0 0.0
    %862 = vmatprep.subr.mxu0 0.0
    %863 = vmatpush1.msra.mxu0 0.0
    %864 = vmatprep.subr.mxu0 0.0
    %865 = vmatpush1.msra.mxu0 0.0
    %866 = vmatprep.subr.mxu0 0.0
    %867 = vmatpush1.msra.mxu0 0.0
    %868 = vmatprep.subr.mxu0 0.0
    %869 = vmatpush1.msra.mxu0 0.0
    %870 = vmatprep.subr.mxu0 0.0
    %871 = vmatpush1.msra.mxu0 0.0
    %872 = vmatprep.subr.mxu0 0.0
    %873 = vmatpush1.msra.mxu0 0.0
    %874 = vmatprep.subr.mxu0 0.0
    %875 = vmatpush1.msra.mxu0 0.0
    %876 = vmatprep.subr.mxu0 0.0
    %877 = vmatpush1.msra.mxu0 0.0
    %878 = vmatprep.subr.mxu0 0.0
    %879 = vmatpush1.msra.mxu0 0.0
    %880 = vmatprep.subr.mxu0 0.0
    %881 = vmatpush1.msra.mxu0 0.0
    %882 = vmatprep.subr.mxu0 0.0
    %883 = vmatpush1.msra.mxu0 0.0
    %884 = vmatprep.subr.mxu0 0.0
    %885 = vmatpush1.msra.mxu0 0.0
    %886 = vmatprep.subr.mxu0 0.0
    %887 = vmatpush1.msra.mxu0 0.0
    %888 = vmatprep.subr.mxu0 0.0
    %889 = vmatpush1.msra.mxu0 0.0
    %890 = vmatprep.subr.mxu0 0.0
    %891 = vmatpush1.msra.mxu0 0.0
    %892 = vmatprep.subr.mxu0 0.0
    %893 = vmatpush1.msra.mxu0 0.0
    %894 = vmatprep.subr.mxu0 0.0
    %895 = vmatpush1.msra.mxu0 0.0
    %896 = vmatprep.subr.mxu0 0.0
    %897 = vmatpush1.msra.mxu0 0.0
    %898 = vmatprep.subr.mxu0 0.0
    %899 = vmatpush1.msra.mxu0 0.0
    %900 = vmatprep.subr.mxu0 0.0
    %901 = vmatpush1.msra.mxu0 0.0
    %902 = vmatprep.subr.mxu0 0.0
    %903 = vmatpush1.msra.mxu0 0.0
    %904 = vmatprep.subr.mxu0 0.0
    %905 = vmatpush1.msra.mxu0 0.0
    %906 = vmatprep.mubr.f32.mxu0 0.0
    %907 = vmatmul.mubr.f32.gmra.mrb[0].mxu0 %v837
    %v908 = vpop.f32.mrb[0].mxu0
    %v909 = vadd.f32 %v834, %v908
    %v910 = vpop.f32.mrb[0].mxu0
    %911 = vmatprep.mubr.f32.mxu0 0.0
    %912 = vmatmul.mubr.f32.gmra.mrb[0].mxu0 %v840
    %v913 = vpop.f32.mrb[0].mxu0
    %v914 = vadd.f32 %v834, %v913
    %v915 = vpop.f32.mrb[0].mxu0
    %916 = vdwg.mxu0
    %v917 = vadd.f32 %v281, %v909
    %v918 = vadd.f32 %v282, %v914
    %v919 = vld [vmem:[%s21] sm:$0x1]
    %v920 = vld [vmem:[%s23] sm:$0x1]
    %v921 = vsel %vm239, %v917, 0.0
    %922 = vadd.xlane.f32.xlu0 %v921
    %v923 = vpop.xlane.xlu0 %922
    %v924 = vsel %vm239, %v918, 0.0
    %925 = vadd.xlane.f32.xlu0 %v924
    %v926 = vpop.xlane.xlu0 %925
    %v927 = vmul.f32 %v923, %v246
    %v928 = vmul.f32 %v926, %v246
    %v929 = vsub.f32 %v917, %v927
    %v930 = vsub.f32 %v918, %v928
    %v931 = vmul.f32 %v929, %v929
    %v932 = vmul.f32 %v930, %v930
    %v933 = vsel %vm239, %v931, 0.0
    %934 = vadd.xlane.f32.xlu0 %v933
    %v935 = vpop.xlane.xlu0 %934
    %v936 = vsel %vm239, %v932, 0.0
    %937 = vadd.xlane.f32.xlu0 %v936
    %v938 = vpop.xlane.xlu0 %937
    %v939 = vmul.f32 %v935, %v246
    %v940 = vmul.f32 %v938, %v246
    %v941 = vadd.f32 %v939, 1e-12
    %v942 = vadd.f32 %v940, 1e-12
    %v943 = vrsqrt.pop %v941
    %v944 = vrsqrt.pop %v942
    %v945 = vmul.f32 %v929, %v943
    %v946 = vmul.f32 %v930, %v944
    %v948 = vlaneseq
    %v949 = vshrl.u32 %v948, 7
    %v950 = vsub.s32 0, %v949
    %v951 = vrot.slane %v919, %v950
    %v953 = vmul.f32 %v945, %v951
    %v954 = vmul.f32 %v946, %v951
    %v956 = vlaneseq
    %v957 = vshrl.u32 %v956, 7
    %v958 = vsub.s32 0, %v957
    %v959 = vrot.slane %v920, %v958
    %v961 = vadd.f32 %v953, %v959
    %v962 = vadd.f32 %v954, %v959
    %v963 = vld [vmem:[%s25] sm:$0xff]
    %v964 = vld [vmem:[%s25 + $0x8] sm:$0xff]
    %v965 = vld [vmem:[%s25 + $0x10] sm:$0xff]
    %v966 = vld [vmem:[%s25 + $0x18] sm:$0xff]
    %v967 = vld [vmem:[%s27] sm:$0x1]
    %v969 = vlaneseq
    %v970 = vshrl.u32 %v969, 7
    %v971 = vsub.s32 0, %v970
    %v972 = vrot.slane %v967, %v971
    %v975 = vsel %vm239, %v961, 0
    %v978 = vsel %vm239, %v962, 0
    %980 = vmatprep.subr.mxu0 0.0
    %981 = vmatpush1.msra.mxu0 %v963
    %982 = vmatprep.subr.mxu0 0.0
    %983 = vmatpush1.msra.mxu0 %v964
    %984 = vmatprep.subr.mxu0 0.0
    %985 = vmatpush1.msra.mxu0 %v965
    %986 = vmatprep.subr.mxu0 0.0
    %987 = vmatpush1.msra.mxu0 %v966
    %988 = vmatprep.subr.mxu0 0.0
    %989 = vmatpush1.msra.mxu0 0.0
    %990 = vmatprep.subr.mxu0 0.0
    %991 = vmatpush1.msra.mxu0 0.0
    %992 = vmatprep.subr.mxu0 0.0
    %993 = vmatpush1.msra.mxu0 0.0
    %994 = vmatprep.subr.mxu0 0.0
    %995 = vmatpush1.msra.mxu0 0.0
    %996 = vmatprep.subr.mxu0 0.0
    %997 = vmatpush1.msra.mxu0 0.0
    %998 = vmatprep.subr.mxu0 0.0
    %999 = vmatpush1.msra.mxu0 0.0
    %1000 = vmatprep.subr.mxu0 0.0
    %1001 = vmatpush1.msra.mxu0 0.0
    %1002 = vmatprep.subr.mxu0 0.0
    %1003 = vmatpush1.msra.mxu0 0.0
    %1004 = vmatprep.subr.mxu0 0.0
    %1005 = vmatpush1.msra.mxu0 0.0
    %1006 = vmatprep.subr.mxu0 0.0
    %1007 = vmatpush1.msra.mxu0 0.0
    %1008 = vmatprep.subr.mxu0 0.0
    %1009 = vmatpush1.msra.mxu0 0.0
    %1010 = vmatprep.subr.mxu0 0.0
    %1011 = vmatpush1.msra.mxu0 0.0
    %1012 = vmatprep.subr.mxu0 0.0
    %1013 = vmatpush1.msra.mxu0 0.0
    %1014 = vmatprep.subr.mxu0 0.0
    %1015 = vmatpush1.msra.mxu0 0.0
    %1016 = vmatprep.subr.mxu0 0.0
    %1017 = vmatpush1.msra.mxu0 0.0
    %1018 = vmatprep.subr.mxu0 0.0
    %1019 = vmatpush1.msra.mxu0 0.0
    %1020 = vmatprep.subr.mxu0 0.0
    %1021 = vmatpush1.msra.mxu0 0.0
    %1022 = vmatprep.subr.mxu0 0.0
    %1023 = vmatpush1.msra.mxu0 0.0
    %1024 = vmatprep.subr.mxu0 0.0
    %1025 = vmatpush1.msra.mxu0 0.0
    %1026 = vmatprep.subr.mxu0 0.0
    %1027 = vmatpush1.msra.mxu0 0.0
    %1028 = vmatprep.subr.mxu0 0.0
    %1029 = vmatpush1.msra.mxu0 0.0
    %1030 = vmatprep.subr.mxu0 0.0
    %1031 = vmatpush1.msra.mxu0 0.0
    %1032 = vmatprep.subr.mxu0 0.0
    %1033 = vmatpush1.msra.mxu0 0.0
    %1034 = vmatprep.subr.mxu0 0.0
    %1035 = vmatpush1.msra.mxu0 0.0
    %1036 = vmatprep.subr.mxu0 0.0
    %1037 = vmatpush1.msra.mxu0 0.0
    %1038 = vmatprep.subr.mxu0 0.0
    %1039 = vmatpush1.msra.mxu0 0.0
    %1040 = vmatprep.subr.mxu0 0.0
    %1041 = vmatpush1.msra.mxu0 0.0
    %1042 = vmatprep.subr.mxu0 0.0
    %1043 = vmatpush1.msra.mxu0 0.0
    %1044 = vmatprep.mubr.f32.mxu0 0.0
    %1045 = vmatmul.mubr.f32.gmra.mrb[0].mxu0 %v975
    %v1046 = vpop.f32.mrb[0].mxu0
    %v1047 = vadd.f32 %v972, %v1046
    %v1048 = vpop.f32.mrb[0].mxu0
    %1049 = vmatprep.mubr.f32.mxu0 0.0
    %1050 = vmatmul.mubr.f32.gmra.mrb[0].mxu0 %v978
    %v1051 = vpop.f32.mrb[0].mxu0
    %v1052 = vadd.f32 %v972, %v1051
    %v1053 = vpop.f32.mrb[0].mxu0
    %1054 = vdwg.mxu0
    %v1055 = vmul.f32 %v1047, 0.5
    %v1056 = vmul.f32 %v1052, 0.5
    %v1057 = vmul.f32 %v1047, 0.044715
    %v1058 = vmul.f32 %v1052, 0.044715
    %v1059 = vmul.f32 %v1057, %v1047
    %v1060 = vmul.f32 %v1058, %v1052
    %v1061 = vmul.f32 %v1059, %v1047
    %v1062 = vmul.f32 %v1060, %v1052
    %v1063 = vadd.f32 %v1047, %v1061
    %v1064 = vadd.f32 %v1052, %v1062
    %v1065 = vmul.f32 %v1063, 0.7978846
    %v1066 = vmul.f32 %v1064, 0.7978846
    %v1067 = vtanh.pop %v1065
    %v1068 = vtanh.pop %v1066
    %v1069 = vadd.f32 %v1067, 1.0
    %v1070 = vadd.f32 %v1068, 1.0
    %v1071 = vmul.f32 %v1055, %v1069
    %v1072 = vmul.f32 %v1056, %v1070
    %v1073 = vld [vmem:[%s29] sm:$0xff]
    %v1074 = vld [vmem:[%s29 + $0x8] sm:$0xff]
    %v1075 = vld [vmem:[%s29 + $0x10] sm:$0xff]
    %v1076 = vld [vmem:[%s29 + $0x18] sm:$0xff]
    %v1077 = vld [vmem:[%s29 + $0x20] sm:$0xff]
    %v1078 = vld [vmem:[%s29 + $0x28] sm:$0xff]
    %v1079 = vld [vmem:[%s29 + $0x30] sm:$0xff]
    %v1080 = vld [vmem:[%s29 + $0x38] sm:$0xff]
    %v1081 = vld [vmem:[%s31] sm:$0x1]
    %v1083 = vlaneseq
    %v1084 = vshrl.u32 %v1083, 7
    %v1085 = vsub.s32 0, %v1084
    %v1086 = vrot.slane %v1081, %v1085
    %v1089 = vsel %vm551, %v1071, 0
    %v1092 = vsel %vm551, %v1072, 0
    %1094 = vmatprep.subr.mxu0 0.0
    %1095 = vmatpush1.msra.mxu0 %v1073
    %1096 = vmatprep.subr.mxu0 0.0
    %1097 = vmatpush1.msra.mxu0 %v1074
    %1098 = vmatprep.subr.mxu0 0.0
    %1099 = vmatpush1.msra.mxu0 %v1075
    %1100 = vmatprep.subr.mxu0 0.0
    %1101 = vmatpush1.msra.mxu0 %v1076
    %1102 = vmatprep.subr.mxu0 0.0
    %1103 = vmatpush1.msra.mxu0 %v1077
    %1104 = vmatprep.subr.mxu0 0.0
    %1105 = vmatpush1.msra.mxu0 %v1078
    %1106 = vmatprep.subr.mxu0 0.0
    %1107 = vmatpush1.msra.mxu0 %v1079
    %1108 = vmatprep.subr.mxu0 0.0
    %1109 = vmatpush1.msra.mxu0 %v1080
    %1110 = vmatprep.subr.mxu0 0.0
    %1111 = vmatpush1.msra.mxu0 0.0
    %1112 = vmatprep.subr.mxu0 0.0
    %1113 = vmatpush1.msra.mxu0 0.0
    %1114 = vmatprep.subr.mxu0 0.0
    %1115 = vmatpush1.msra.mxu0 0.0
    %1116 = vmatprep.subr.mxu0 0.0
    %1117 = vmatpush1.msra.mxu0 0.0
    %1118 = vmatprep.subr.mxu0 0.0
    %1119 = vmatpush1.msra.mxu0 0.0
    %1120 = vmatprep.subr.mxu0 0.0
    %1121 = vmatpush1.msra.mxu0 0.0
    %1122 = vmatprep.subr.mxu0 0.0
    %1123 = vmatpush1.msra.mxu0 0.0
    %1124 = vmatprep.subr.mxu0 0.0
    %1125 = vmatpush1.msra.mxu0 0.0
    %1126 = vmatprep.subr.mxu0 0.0
    %1127 = vmatpush1.msra.mxu0 0.0
    %1128 = vmatprep.subr.mxu0 0.0
    %1129 = vmatpush1.msra.mxu0 0.0
    %1130 = vmatprep.subr.mxu0 0.0
    %1131 = vmatpush1.msra.mxu0 0.0
    %1132 = vmatprep.subr.mxu0 0.0
    %1133 = vmatpush1.msra.mxu0 0.0
    %1134 = vmatprep.subr.mxu0 0.0
    %1135 = vmatpush1.msra.mxu0 0.0
    %1136 = vmatprep.subr.mxu0 0.0
    %1137 = vmatpush1.msra.mxu0 0.0
    %1138 = vmatprep.subr.mxu0 0.0
    %1139 = vmatpush1.msra.mxu0 0.0
    %1140 = vmatprep.subr.mxu0 0.0
    %1141 = vmatpush1.msra.mxu0 0.0
    %1142 = vmatprep.subr.mxu0 0.0
    %1143 = vmatpush1.msra.mxu0 0.0
    %1144 = vmatprep.subr.mxu0 0.0
    %1145 = vmatpush1.msra.mxu0 0.0
    %1146 = vmatprep.subr.mxu0 0.0
    %1147 = vmatpush1.msra.mxu0 0.0
    %1148 = vmatprep.subr.mxu0 0.0
    %1149 = vmatpush1.msra.mxu0 0.0
    %1150 = vmatprep.subr.mxu0 0.0
    %1151 = vmatpush1.msra.mxu0 0.0
    %1152 = vmatprep.subr.mxu0 0.0
    %1153 = vmatpush1.msra.mxu0 0.0
    %1154 = vmatprep.subr.mxu0 0.0
    %1155 = vmatpush1.msra.mxu0 0.0
    %1156 = vmatprep.subr.mxu0 0.0
    %1157 = vmatpush1.msra.mxu0 0.0
    %1158 = vmatprep.mubr.f32.mxu0 0.0
    %1159 = vmatmul.mubr.f32.gmra.mrb[0].mxu0 %v1089
    %v1160 = vpop.f32.mrb[0].mxu0
    %v1161 = vadd.f32 %v1086, %v1160
    %v1162 = vpop.f32.mrb[0].mxu0
    %1163 = vmatprep.mubr.f32.mxu0 0.0
    %1164 = vmatmul.mubr.f32.gmra.mrb[0].mxu0 %v1092
    %v1165 = vpop.f32.mrb[0].mxu0
    %v1166 = vadd.f32 %v1086, %v1165
    %v1167 = vpop.f32.mrb[0].mxu0
    %1168 = vdwg.mxu0
    %v1169 = vadd.f32 %v961, %v1161
    %v1170 = vadd.f32 %v962, %v1166
    %v1171 = vld [vmem:[%s33] sm:$0x1]
    %v1172 = vld [vmem:[%s35] sm:$0x1]
    %v1173 = vsel %vm239, %v1169, 0.0
    %1174 = vadd.xlane.f32.xlu0 %v1173
    %v1175 = vpop.xlane.xlu0 %1174
    %v1176 = vsel %vm239, %v1170, 0.0
    %1177 = vadd.xlane.f32.xlu0 %v1176
    %v1178 = vpop.xlane.xlu0 %1177
    %v1179 = vmul.f32 %v1175, %v246
    %v1180 = vmul.f32 %v1178, %v246
    %v1181 = vsub.f32 %v1169, %v1179
    %v1182 = vsub.f32 %v1170, %v1180
    %v1183 = vmul.f32 %v1181, %v1181
    %v1184 = vmul.f32 %v1182, %v1182
    %v1185 = vsel %vm239, %v1183, 0.0
    %1186 = vadd.xlane.f32.xlu0 %v1185
    %v1187 = vpop.xlane.xlu0 %1186
    %v1188 = vsel %vm239, %v1184, 0.0
    %1189 = vadd.xlane.f32.xlu0 %v1188
    %v1190 = vpop.xlane.xlu0 %1189
    %v1191 = vmul.f32 %v1187, %v246
    %v1192 = vmul.f32 %v1190, %v246
    %v1193 = vadd.f32 %v1191, 1e-12
    %v1194 = vadd.f32 %v1192, 1e-12
    %v1195 = vrsqrt.pop %v1193
    %v1196 = vrsqrt.pop %v1194
    %v1197 = vmul.f32 %v1181, %v1195
    %v1198 = vmul.f32 %v1182, %v1196
    %v1200 = vlaneseq
    %v1201 = vshrl.u32 %v1200, 7
    %v1202 = vsub.s32 0, %v1201
    %v1203 = vrot.slane %v1171, %v1202
    %v1205 = vmul.f32 %v1197, %v1203
    %v1206 = vmul.f32 %v1198, %v1203
    %v1208 = vlaneseq
    %v1209 = vshrl.u32 %v1208, 7
    %v1210 = vsub.s32 0, %v1209
    %v1211 = vrot.slane %v1172, %v1210
    %v1213 = vadd.f32 %v1205, %v1211
    %v1214 = vadd.f32 %v1206, %v1211
    %v1215 = vld [vmem:[%s37] sm:$0xff]
    %v1216 = vld [vmem:[%s37 + $0x8] sm:$0xff]
    %v1217 = vld [vmem:[%s37 + $0x10] sm:$0xff]
    %v1218 = vld [vmem:[%s37 + $0x18] sm:$0xff]
    %v1219 = vld [vmem:[%s39] sm:$0x1]
    %v1221 = vlaneseq
    %v1222 = vshrl.u32 %v1221, 7
    %v1223 = vsub.s32 0, %v1222
    %v1224 = vrot.slane %v1219, %v1223
    %v1227 = vsel %vm239, %v1213, 0
    %v1230 = vsel %vm239, %v1214, 0
    %1232 = vmatprep.subr.mxu0 0.0
    %1233 = vmatpush1.msra.mxu0 %v1215
    %1234 = vmatprep.subr.mxu0 0.0
    %1235 = vmatpush1.msra.mxu0 %v1216
    %1236 = vmatprep.subr.mxu0 0.0
    %1237 = vmatpush1.msra.mxu0 %v1217
    %1238 = vmatprep.subr.mxu0 0.0
    %1239 = vmatpush1.msra.mxu0 %v1218
    %1240 = vmatprep.subr.mxu0 0.0
    %1241 = vmatpush1.msra.mxu0 0.0
    %1242 = vmatprep.subr.mxu0 0.0
    %1243 = vmatpush1.msra.mxu0 0.0
    %1244 = vmatprep.subr.mxu0 0.0
    %1245 = vmatpush1.msra.mxu0 0.0
    %1246 = vmatprep.subr.mxu0 0.0
    %1247 = vmatpush1.msra.mxu0 0.0
    %1248 = vmatprep.subr.mxu0 0.0
    %1249 = vmatpush1.msra.mxu0 0.0
    %1250 = vmatprep.subr.mxu0 0.0
    %1251 = vmatpush1.msra.mxu0 0.0
    %1252 = vmatprep.subr.mxu0 0.0
    %1253 = vmatpush1.msra.mxu0 0.0
    %1254 = vmatprep.subr.mxu0 0.0
    %1255 = vmatpush1.msra.mxu0 0.0
    %1256 = vmatprep.subr.mxu0 0.0
    %1257 = vmatpush1.msra.mxu0 0.0
    %1258 = vmatprep.subr.mxu0 0.0
    %1259 = vmatpush1.msra.mxu0 0.0
    %1260 = vmatprep.subr.mxu0 0.0
    %1261 = vmatpush1.msra.mxu0 0.0
    %1262 = vmatprep.subr.mxu0 0.0
    %1263 = vmatpush1.msra.mxu0 0.0
    %1264 = vmatprep.subr.mxu0 0.0
    %1265 = vmatpush1.msra.mxu0 0.0
    %1266 = vmatprep.subr.mxu0 0.0
    %1267 = vmatpush1.msra.mxu0 0.0
    %1268 = vmatprep.subr.mxu0 0.0
    %1269 = vmatpush1.msra.mxu0 0.0
    %1270 = vmatprep.subr.mxu0 0.0
    %1271 = vmatpush1.msra.mxu0 0.0
    %1272 = vmatprep.subr.mxu0 0.0
    %1273 = vmatpush1.msra.mxu0 0.0
    %1274 = vmatprep.subr.mxu0 0.0
    %1275 = vmatpush1.msra.mxu0 0.0
    %1276 = vmatprep.subr.mxu0 0.0
    %1277 = vmatpush1.msra.mxu0 0.0
    %1278 = vmatprep.subr.mxu0 0.0
    %1279 = vmatpush1.msra.mxu0 0.0
    %1280 = vmatprep.subr.mxu0 0.0
    %1281 = vmatpush1.msra.mxu0 0.0
    %1282 = vmatprep.subr.mxu0 0.0
    %1283 = vmatpush1.msra.mxu0 0.0
    %1284 = vmatprep.subr.mxu0 0.0
    %1285 = vmatpush1.msra.mxu0 0.0
    %1286 = vmatprep.subr.mxu0 0.0
    %1287 = vmatpush1.msra.mxu0 0.0
    %1288 = vmatprep.subr.mxu0 0.0
    %1289 = vmatpush1.msra.mxu0 0.0
    %1290 = vmatprep.subr.mxu0 0.0
    %1291 = vmatpush1.msra.mxu0 0.0
    %1292 = vmatprep.subr.mxu0 0.0
    %1293 = vmatpush1.msra.mxu0 0.0
    %1294 = vmatprep.subr.mxu0 0.0
    %1295 = vmatpush1.msra.mxu0 0.0
    %1296 = vmatprep.mubr.f32.mxu0 0.0
    %1297 = vmatmul.mubr.f32.gmra.mrb[0].mxu0 %v1227
    %v1298 = vpop.f32.mrb[0].mxu0
    %v1299 = vadd.f32 %v1224, %v1298
    %v1300 = vpop.f32.mrb[0].mxu0
    %1301 = vmatprep.mubr.f32.mxu0 0.0
    %1302 = vmatmul.mubr.f32.gmra.mrb[0].mxu0 %v1230
    %v1303 = vpop.f32.mrb[0].mxu0
    %v1304 = vadd.f32 %v1224, %v1303
    %v1305 = vpop.f32.mrb[0].mxu0
    %1306 = vdwg.mxu0
    %1309 = vrot.lane.b32.xlu0 %v1299, 120
    %v1310 = vpop.permute.xlu0 %1309
    %1311 = vrot.lane.b32.xlu0 %v1304, 120
    %v1312 = vpop.permute.xlu0 %1311
    %1313 = vrot.lane.b32.xlu0 %v1299, 112
    %v1314 = vpop.permute.xlu0 %1313
    %1315 = vrot.lane.b32.xlu0 %v1304, 112
    %v1316 = vpop.permute.xlu0 %1315
    %1317 = vrot.lane.b32.xlu0 %v1299, 104
    %v1318 = vpop.permute.xlu0 %1317
    %1319 = vrot.lane.b32.xlu0 %v1304, 104
    %v1320 = vpop.permute.xlu0 %1319
    %1321 = vrot.lane.b32.xlu0 %v1299, 96
    %v1322 = vpop.permute.xlu0 %1321
    %1323 = vrot.lane.b32.xlu0 %v1304, 96
    %v1324 = vpop.permute.xlu0 %1323
    %1325 = vrot.lane.b32.xlu0 %v1310, 96
    %v1326 = vpop.permute.xlu0 %1325
    %1327 = vrot.lane.b32.xlu0 %v1312, 96
    %v1328 = vpop.permute.xlu0 %1327
    %1329 = vrot.lane.b32.xlu0 %v1314, 96
    %v1330 = vpop.permute.xlu0 %1329
    %1331 = vrot.lane.b32.xlu0 %v1316, 96
    %v1332 = vpop.permute.xlu0 %1331
    %1333 = vrot.lane.b32.xlu0 %v1318, 96
    %v1334 = vpop.permute.xlu0 %1333
    %1335 = vrot.lane.b32.xlu0 %v1320, 96
    %v1336 = vpop.permute.xlu0 %1335
    %v1337 = vsel %vm413, %v1299, 0
    %v1339 = vsel %vm413, %v1304, 0
    %v1341 = vsel %vm413, %v1310, 0
    %v1343 = vsel %vm413, %v1312, 0
    %v1345 = vsel %vm413, %v1314, 0
    %v1347 = vsel %vm413, %v1316, 0
    %v1349 = vsel %vm413, %v1318, 0
    %v1351 = vsel %vm413, %v1320, 0
    %v1353 = vsel %vm413, %v1322, 0
    %v1355 = vsel %vm413, %v1324, 0
    %v1357 = vsel %vm413, %v1326, 0
    %v1359 = vsel %vm413, %v1328, 0
    %v1361 = vsel %vm413, %v1330, 0
    %v1363 = vsel %vm413, %v1332, 0
    %v1365 = vsel %vm413, %v1334, 0
    %v1367 = vsel %vm413, %v1336, 0
    %1369 = vmatprep.subr.mxu0 0.0
    %1370 = vmatpush1.xpose.msra.mxu0 %v1353
    %1371 = vmatprep.subr.mxu0 0.0
    %1372 = vmatpush1.xpose.msra.mxu0 %v1355
    %1373 = vmatprep.subr.mxu0 0.0
    %1374 = vmatpush1.xpose.msra.mxu0 %v1357
    %1375 = vmatprep.subr.mxu0 0.0
    %1376 = vmatpush1.xpose.msra.mxu0 %v1359
    %1377 = vmatprep.subr.mxu0 0.0
    %1378 = vmatpush1.xpose.msra.mxu0 %v1361
    %1379 = vmatprep.subr.mxu0 0.0
    %1380 = vmatpush1.xpose.msra.mxu0 %v1363
    %1381 = vmatprep.subr.mxu0 0.0
    %1382 = vmatpush1.xpose.msra.mxu0 %v1365
    %1383 = vmatprep.subr.mxu0 0.0
    %1384 = vmatpush1.xpose.msra.mxu0 %v1367
    %1385 = vmatprep.subr.mxu0 0.0
    %1386 = vmatpush1.xpose.msra.mxu0 0.0
    %1387 = vmatprep.subr.mxu0 0.0
    %1388 = vmatpush1.xpose.msra.mxu0 0.0
    %1389 = vmatprep.subr.mxu0 0.0
    %1390 = vmatpush1.xpose.msra.mxu0 0.0
    %1391 = vmatprep.subr.mxu0 0.0
    %1392 = vmatpush1.xpose.msra.mxu0 0.0
    %1393 = vmatprep.subr.mxu0 0.0
    %1394 = vmatpush1.xpose.msra.mxu0 0.0
    %1395 = vmatprep.subr.mxu0 0.0
    %1396 = vmatpush1.xpose.msra.mxu0 0.0
    %1397 = vmatprep.subr.mxu0 0.0
    %1398 = vmatpush1.xpose.msra.mxu0 0.0
    %1399 = vmatprep.subr.mxu0 0.0
    %1400 = vmatpush1.xpose.msra.mxu0 0.0
    %1401 = vmatprep.subr.mxu0 0.0
    %1402 = vmatpush1.xpose.msra.mxu0 0.0
    %1403 = vmatprep.subr.mxu0 0.0
    %1404 = vmatpush1.xpose.msra.mxu0 0.0
    %1405 = vmatprep.subr.mxu0 0.0
    %1406 = vmatpush1.xpose.msra.mxu0 0.0
    %1407 = vmatprep.subr.mxu0 0.0
    %1408 = vmatpush1.xpose.msra.mxu0 0.0
    %1409 = vmatprep.subr.mxu0 0.0
    %1410 = vmatpush1.xpose.msra.mxu0 0.0
    %1411 = vmatprep.subr.mxu0 0.0
    %1412 = vmatpush1.xpose.msra.mxu0 0.0
    %1413 = vmatprep.subr.mxu0 0.0
    %1414 = vmatpush1.xpose.msra.mxu0 0.0
    %1415 = vmatprep.subr.mxu0 0.0
    %1416 = vmatpush1.xpose.msra.mxu0 0.0
    %1417 = vmatprep.subr.mxu0 0.0
    %1418 = vmatpush1.xpose.msra.mxu0 0.0
    %1419 = vmatprep.subr.mxu0 0.0
    %1420 = vmatpush1.xpose.msra.mxu0 0.0
    %1421 = vmatprep.subr.mxu0 0.0
    %1422 = vmatpush1.xpose.msra.mxu0 0.0
    %1423 = vmatprep.subr.mxu0 0.0
    %1424 = vmatpush1.xpose.msra.mxu0 0.0
    %1425 = vmatprep.subr.mxu0 0.0
    %1426 = vmatpush1.xpose.msra.mxu0 0.0
    %1427 = vmatprep.subr.mxu0 0.0
    %1428 = vmatpush1.xpose.msra.mxu0 0.0
    %1429 = vmatprep.subr.mxu0 0.0
    %1430 = vmatpush1.xpose.msra.mxu0 0.0
    %1431 = vmatprep.subr.mxu0 0.0
    %1432 = vmatpush1.xpose.msra.mxu0 0.0
    %1433 = vmatprep.mubr.f32.mxu0 0.0
    %1434 = vmatmul.mubr.f32.gmra.mrb[0].mxu0 %v1337
    %v1435 = vpop.f32.mrb[0].mxu0
    %v1436 = vadd.f32 %v283, %v1435
    %v1437 = vpop.f32.mrb[0].mxu0
    %1438 = vmatprep.mubr.f32.mxu0 0.0
    %1439 = vmatmul.mubr.f32.gmra.mrb[0].mxu0 %v1339
    %v1440 = vpop.f32.mrb[0].mxu0
    %v1441 = vadd.f32 %v284, %v1440
    %v1442 = vpop.f32.mrb[0].mxu0
    %1443 = vmatprep.mubr.f32.mxu0 0.0
    %1444 = vmatmul.mubr.f32.gmra.mrb[0].mxu0 %v1341
    %v1445 = vpop.f32.mrb[0].mxu0
    %v1446 = vadd.f32 %v285, %v1445
    %v1447 = vpop.f32.mrb[0].mxu0
    %1448 = vmatprep.mubr.f32.mxu0 0.0
    %1449 = vmatmul.mubr.f32.gmra.mrb[0].mxu0 %v1343
    %v1450 = vpop.f32.mrb[0].mxu0
    %v1451 = vadd.f32 %v286, %v1450
    %v1452 = vpop.f32.mrb[0].mxu0
    %1453 = vmatprep.mubr.f32.mxu0 0.0
    %1454 = vmatmul.mubr.f32.gmra.mrb[0].mxu0 %v1345
    %v1455 = vpop.f32.mrb[0].mxu0
    %v1456 = vadd.f32 %v287, %v1455
    %v1457 = vpop.f32.mrb[0].mxu0
    %1458 = vmatprep.mubr.f32.mxu0 0.0
    %1459 = vmatmul.mubr.f32.gmra.mrb[0].mxu0 %v1347
    %v1460 = vpop.f32.mrb[0].mxu0
    %v1461 = vadd.f32 %v288, %v1460
    %v1462 = vpop.f32.mrb[0].mxu0
    %1463 = vmatprep.mubr.f32.mxu0 0.0
    %1464 = vmatmul.mubr.f32.gmra.mrb[0].mxu0 %v1349
    %v1465 = vpop.f32.mrb[0].mxu0
    %v1466 = vadd.f32 %v289, %v1465
    %v1467 = vpop.f32.mrb[0].mxu0
    %1468 = vmatprep.mubr.f32.mxu0 0.0
    %1469 = vmatmul.mubr.f32.gmra.mrb[0].mxu0 %v1351
    %v1470 = vpop.f32.mrb[0].mxu0
    %v1471 = vadd.f32 %v290, %v1470
    %v1472 = vpop.f32.mrb[0].mxu0
    %1473 = vdwg.mxu0
    %v1474 = vsel %vm551, %v1436, -inf
    %1475 = vmax.xlane.f32.xlu0 %v1474
    %v1476 = vpop.xlane.xlu0 %1475
    %v1477 = vsel %vm551, %v1441, -inf
    %1478 = vmax.xlane.f32.xlu0 %v1477
    %v1479 = vpop.xlane.xlu0 %1478
    %v1480 = vsel %vm551, %v1446, -inf
    %1481 = vmax.xlane.f32.xlu0 %v1480
    %v1482 = vpop.xlane.xlu0 %1481
    %v1483 = vsel %vm551, %v1451, -inf
    %1484 = vmax.xlane.f32.xlu0 %v1483
    %v1485 = vpop.xlane.xlu0 %1484
    %v1486 = vsel %vm551, %v1456, -inf
    %1487 = vmax.xlane.f32.xlu0 %v1486
    %v1488 = vpop.xlane.xlu0 %1487
    %v1489 = vsel %vm551, %v1461, -inf
    %1490 = vmax.xlane.f32.xlu0 %v1489
    %v1491 = vpop.xlane.xlu0 %1490
    %v1492 = vsel %vm551, %v1466, -inf
    %1493 = vmax.xlane.f32.xlu0 %v1492
    %v1494 = vpop.xlane.xlu0 %1493
    %v1495 = vsel %vm551, %v1471, -inf
    %1496 = vmax.xlane.f32.xlu0 %v1495
    %v1497 = vpop.xlane.xlu0 %1496
    %v1498 = vsub.f32 %v1436, %v1476
    %v1499 = vsub.f32 %v1441, %v1479
    %v1500 = vsub.f32 %v1446, %v1482
    %v1501 = vsub.f32 %v1451, %v1485
    %v1502 = vsub.f32 %v1456, %v1488
    %v1503 = vsub.f32 %v1461, %v1491
    %v1504 = vsub.f32 %v1466, %v1494
    %v1505 = vsub.f32 %v1471, %v1497
    %v1506 = vmul.f32 %v1498, 1.442695
    %v1507 = vpow.pop %v1506
    %v1508 = vmul.f32 %v1499, 1.442695
    %v1509 = vpow.pop %v1508
    %v1510 = vmul.f32 %v1500, 1.442695
    %v1511 = vpow.pop %v1510
    %v1512 = vmul.f32 %v1501, 1.442695
    %v1513 = vpow.pop %v1512
    %v1514 = vmul.f32 %v1502, 1.442695
    %v1515 = vpow.pop %v1514
    %v1516 = vmul.f32 %v1503, 1.442695
    %v1517 = vpow.pop %v1516
    %v1518 = vmul.f32 %v1504, 1.442695
    %v1519 = vpow.pop %v1518
    %v1520 = vmul.f32 %v1505, 1.442695
    %v1521 = vpow.pop %v1520
    %v1522 = vsel %vm551, %v1507, 0.0
    %1523 = vadd.xlane.f32.xlu0 %v1522
    %v1524 = vpop.xlane.xlu0 %1523
    %v1525 = vsel %vm551, %v1509, 0.0
    %1526 = vadd.xlane.f32.xlu0 %v1525
    %v1527 = vpop.xlane.xlu0 %1526
    %v1528 = vsel %vm551, %v1511, 0.0
    %1529 = vadd.xlane.f32.xlu0 %v1528
    %v1530 = vpop.xlane.xlu0 %1529
    %v1531 = vsel %vm551, %v1513, 0.0
    %1532 = vadd.xlane.f32.xlu0 %v1531
    %v1533 = vpop.xlane.xlu0 %1532
    %v1534 = vsel %vm551, %v1515, 0.0
    %1535 = vadd.xlane.f32.xlu0 %v1534
    %v1536 = vpop.xlane.xlu0 %1535
    %v1537 = vsel %vm551, %v1517, 0.0
    %1538 = vadd.xlane.f32.xlu0 %v1537
    %v1539 = vpop.xlane.xlu0 %1538
    %v1540 = vsel %vm551, %v1519, 0.0
    %1541 = vadd.xlane.f32.xlu0 %v1540
    %v1542 = vpop.xlane.xlu0 %1541
    %v1543 = vsel %vm551, %v1521, 0.0
    %1544 = vadd.xlane.f32.xlu0 %v1543
    %v1545 = vpop.xlane.xlu0 %1544
    %v1546 = vrcp.pop %v1524
    %v1547 = vrcp.pop %v1527
    %v1548 = vrcp.pop %v1530
    %v1549 = vrcp.pop %v1533
    %v1550 = vrcp.pop %v1536
    %v1551 = vrcp.pop %v1539
    %v1552 = vrcp.pop %v1542
    %v1553 = vrcp.pop %v1545
    %v1554 = vmul.f32 %v1507, %v1546
    %v1555 = vmul.f32 %v1509, %v1547
    %v1556 = vmul.f32 %v1511, %v1548
    %v1557 = vmul.f32 %v1513, %v1549
    %v1558 = vmul.f32 %v1515, %v1550
    %v1559 = vmul.f32 %v1517, %v1551
    %v1560 = vmul.f32 %v1519, %v1552
    %v1561 = vmul.f32 %v1521, %v1553
    %1562 = vrot.lane.b32.xlu0 %v1299, 64
    %v1563 = vpop.permute.xlu0 %1562
    %1564 = vrot.lane.b32.xlu0 %v1304, 64
    %v1565 = vpop.permute.xlu0 %1564
    %1566 = vrot.lane.b32.xlu0 %v1310, 64
    %v1567 = vpop.permute.xlu0 %1566
    %1568 = vrot.lane.b32.xlu0 %v1312, 64
    %v1569 = vpop.permute.xlu0 %1568
    %1570 = vrot.lane.b32.xlu0 %v1314, 64
    %v1571 = vpop.permute.xlu0 %1570
    %1572 = vrot.lane.b32.xlu0 %v1316, 64
    %v1573 = vpop.permute.xlu0 %1572
    %1574 = vrot.lane.b32.xlu0 %v1318, 64
    %v1575 = vpop.permute.xlu0 %1574
    %1576 = vrot.lane.b32.xlu0 %v1320, 64
    %v1577 = vpop.permute.xlu0 %1576
    %v1587 = vsel %vm551, %v1554, 0
    %v1590 = vsel %vm551, %v1555, 0
    %v1593 = vsel %vm551, %v1556, 0
    %v1596 = vsel %vm551, %v1557, 0
    %v1599 = vsel %vm551, %v1558, 0
    %v1602 = vsel %vm551, %v1559, 0
    %v1605 = vsel %vm551, %v1560, 0
    %v1608 = vsel %vm551, %v1561, 0
    %1610 = vmatprep.subr.mxu0 0.0
    %1611 = vmatpush1.msra.mxu0 %v1563
    %1612 = vmatprep.subr.mxu0 0.0
    %1613 = vmatpush1.msra.mxu0 %v1565
    %1614 = vmatprep.subr.mxu0 0.0
    %1615 = vmatpush1.msra.mxu0 %v1567
    %1616 = vmatprep.subr.mxu0 0.0
    %1617 = vmatpush1.msra.mxu0 %v1569
    %1618 = vmatprep.subr.mxu0 0.0
    %1619 = vmatpush1.msra.mxu0 %v1571
    %1620 = vmatprep.subr.mxu0 0.0
    %1621 = vmatpush1.msra.mxu0 %v1573
    %1622 = vmatprep.subr.mxu0 0.0
    %1623 = vmatpush1.msra.mxu0 %v1575
    %1624 = vmatprep.subr.mxu0 0.0
    %1625 = vmatpush1.msra.mxu0 %v1577
    %1626 = vmatprep.subr.mxu0 0.0
    %1627 = vmatpush1.msra.mxu0 0.0
    %1628 = vmatprep.subr.mxu0 0.0
    %1629 = vmatpush1.msra.mxu0 0.0
    %1630 = vmatprep.subr.mxu0 0.0
    %1631 = vmatpush1.msra.mxu0 0.0
    %1632 = vmatprep.subr.mxu0 0.0
    %1633 = vmatpush1.msra.mxu0 0.0
    %1634 = vmatprep.subr.mxu0 0.0
    %1635 = vmatpush1.msra.mxu0 0.0
    %1636 = vmatprep.subr.mxu0 0.0
    %1637 = vmatpush1.msra.mxu0 0.0
    %1638 = vmatprep.subr.mxu0 0.0
    %1639 = vmatpush1.msra.mxu0 0.0
    %1640 = vmatprep.subr.mxu0 0.0
    %1641 = vmatpush1.msra.mxu0 0.0
    %1642 = vmatprep.subr.mxu0 0.0
    %1643 = vmatpush1.msra.mxu0 0.0
    %1644 = vmatprep.subr.mxu0 0.0
    %1645 = vmatpush1.msra.mxu0 0.0
    %1646 = vmatprep.subr.mxu0 0.0
    %1647 = vmatpush1.msra.mxu0 0.0
    %1648 = vmatprep.subr.mxu0 0.0
    %1649 = vmatpush1.msra.mxu0 0.0
    %1650 = vmatprep.subr.mxu0 0.0
    %1651 = vmatpush1.msra.mxu0 0.0
    %1652 = vmatprep.subr.mxu0 0.0
    %1653 = vmatpush1.msra.mxu0 0.0
    %1654 = vmatprep.subr.mxu0 0.0
    %1655 = vmatpush1.msra.mxu0 0.0
    %1656 = vmatprep.subr.mxu0 0.0
    %1657 = vmatpush1.msra.mxu0 0.0
    %1658 = vmatprep.subr.mxu0 0.0
    %1659 = vmatpush1.msra.mxu0 0.0
    %1660 = vmatprep.subr.mxu0 0.0
    %1661 = vmatpush1.msra.mxu0 0.0
    %1662 = vmatprep.subr.mxu0 0.0
    %1663 = vmatpush1.msra.mxu0 0.0
    %1664 = vmatprep.subr.mxu0 0.0
    %1665 = vmatpush1.msra.mxu0 0.0
    %1666 = vmatprep.subr.mxu0 0.0
    %1667 = vmatpush1.msra.mxu0 0.0
    %1668 = vmatprep.subr.mxu0 0.0
    %1669 = vmatpush1.msra.mxu0 0.0
    %1670 = vmatprep.subr.mxu0 0.0
    %1671 = vmatpush1.msra.mxu0 0.0
    %1672 = vmatprep.subr.mxu0 0.0
    %1673 = vmatpush1.msra.mxu0 0.0
    %1674 = vmatprep.mubr.f32.mxu0 0.0
    %1675 = vmatmul.mubr.f32.gmra.mrb[0].mxu0 %v1587
    %v1676 = vpop.f32.mrb[0].mxu0
    %v1677 = vadd.f32 0.0, %v1676
    %v1678 = vpop.f32.mrb[0].mxu0
    %1679 = vmatprep.mubr.f32.mxu0 0.0
    %1680 = vmatmul.mubr.f32.gmra.mrb[0].mxu0 %v1590
    %v1681 = vpop.f32.mrb[0].mxu0
    %v1682 = vadd.f32 0.0, %v1681
    %v1683 = vpop.f32.mrb[0].mxu0
    %1684 = vmatprep.mubr.f32.mxu0 0.0
    %1685 = vmatmul.mubr.f32.gmra.mrb[0].mxu0 %v1593
    %v1686 = vpop.f32.mrb[0].mxu0
    %v1687 = vadd.f32 0.0, %v1686
    %v1688 = vpop.f32.mrb[0].mxu0
    %1689 = vmatprep.mubr.f32.mxu0 0.0
    %1690 = vmatmul.mubr.f32.gmra.mrb[0].mxu0 %v1596
    %v1691 = vpop.f32.mrb[0].mxu0
    %v1692 = vadd.f32 0.0, %v1691
    %v1693 = vpop.f32.mrb[0].mxu0
    %1694 = vmatprep.mubr.f32.mxu0 0.0
    %1695 = vmatmul.mubr.f32.gmra.mrb[0].mxu0 %v1599
    %v1696 = vpop.f32.mrb[0].mxu0
    %v1697 = vadd.f32 0.0, %v1696
    %v1698 = vpop.f32.mrb[0].mxu0
    %1699 = vmatprep.mubr.f32.mxu0 0.0
    %1700 = vmatmul.mubr.f32.gmra.mrb[0].mxu0 %v1602
    %v1701 = vpop.f32.mrb[0].mxu0
    %v1702 = vadd.f32 0.0, %v1701
    %v1703 = vpop.f32.mrb[0].mxu0
    %1704 = vmatprep.mubr.f32.mxu0 0.0
    %1705 = vmatmul.mubr.f32.gmra.mrb[0].mxu0 %v1605
    %v1706 = vpop.f32.mrb[0].mxu0
    %v1707 = vadd.f32 0.0, %v1706
    %v1708 = vpop.f32.mrb[0].mxu0
    %1709 = vmatprep.mubr.f32.mxu0 0.0
    %1710 = vmatmul.mubr.f32.gmra.mrb[0].mxu0 %v1608
    %v1711 = vpop.f32.mrb[0].mxu0
    %v1712 = vadd.f32 0.0, %v1711
    %v1713 = vpop.f32.mrb[0].mxu0
    %1714 = vdwg.mxu0
    %1717 = vrot.lane.b32.xlu0 %v1687, 8
    %v1718 = vpop.permute.xlu0 %1717
    %1719 = vrot.lane.b32.xlu0 %v1692, 8
    %v1720 = vpop.permute.xlu0 %1719
    %1725 = vrot.lane.b32.xlu0 %v1697, 16
    %v1726 = vpop.permute.xlu0 %1725
    %1727 = vrot.lane.b32.xlu0 %v1702, 16
    %v1728 = vpop.permute.xlu0 %1727
    %1733 = vrot.lane.b32.xlu0 %v1707, 24
    %v1734 = vpop.permute.xlu0 %1733
    %1735 = vrot.lane.b32.xlu0 %v1712, 24
    %v1736 = vpop.permute.xlu0 %1735
    %v1739 = vsel %vm413, %v1677, %v1718
    %v1740 = vsel %vm413, %v1682, %v1720
    %v1741 = vsel %vm819, %v1739, %v1726
    %v1742 = vsel %vm819, %v1740, %v1728
    %v1743 = vsel %vm822, %v1741, %v1734
    %v1744 = vsel %vm822, %v1742, %v1736
    %v1745 = vld [vmem:[%s41] sm:$0xff]
    %v1746 = vld [vmem:[%s41 + $0x8] sm:$0xff]
    %v1747 = vld [vmem:[%s41 + $0x10] sm:$0xff]
    %v1748 = vld [vmem:[%s41 + $0x18] sm:$0xff]
    %v1749 = vld [vmem:[%s43] sm:$0x1]
    %v1751 = vlaneseq
    %v1752 = vshrl.u32 %v1751, 7
    %v1753 = vsub.s32 0, %v1752
    %v1754 = vrot.slane %v1749, %v1753
    %v1757 = vsel %vm239, %v1743, 0
    %v1760 = vsel %vm239, %v1744, 0
    %1762 = vmatprep.subr.mxu0 0.0
    %1763 = vmatpush1.msra.mxu0 %v1745
    %1764 = vmatprep.subr.mxu0 0.0
    %1765 = vmatpush1.msra.mxu0 %v1746
    %1766 = vmatprep.subr.mxu0 0.0
    %1767 = vmatpush1.msra.mxu0 %v1747
    %1768 = vmatprep.subr.mxu0 0.0
    %1769 = vmatpush1.msra.mxu0 %v1748
    %1770 = vmatprep.subr.mxu0 0.0
    %1771 = vmatpush1.msra.mxu0 0.0
    %1772 = vmatprep.subr.mxu0 0.0
    %1773 = vmatpush1.msra.mxu0 0.0
    %1774 = vmatprep.subr.mxu0 0.0
    %1775 = vmatpush1.msra.mxu0 0.0
    %1776 = vmatprep.subr.mxu0 0.0
    %1777 = vmatpush1.msra.mxu0 0.0
    %1778 = vmatprep.subr.mxu0 0.0
    %1779 = vmatpush1.msra.mxu0 0.0
    %1780 = vmatprep.subr.mxu0 0.0
    %1781 = vmatpush1.msra.mxu0 0.0
    %1782 = vmatprep.subr.mxu0 0.0
    %1783 = vmatpush1.msra.mxu0 0.0
    %1784 = vmatprep.subr.mxu0 0.0
    %1785 = vmatpush1.msra.mxu0 0.0
    %1786 = vmatprep.subr.mxu0 0.0
    %1787 = vmatpush1.msra.mxu0 0.0
    %1788 = vmatprep.subr.mxu0 0.0
    %1789 = vmatpush1.msra.mxu0 0.0
    %1790 = vmatprep.subr.mxu0 0.0
    %1791 = vmatpush1.msra.mxu0 0.0
    %1792 = vmatprep.subr.mxu0 0.0
    %1793 = vmatpush1.msra.mxu0 0.0
    %1794 = vmatprep.subr.mxu0 0.0
    %1795 = vmatpush1.msra.mxu0 0.0
    %1796 = vmatprep.subr.mxu0 0.0
    %1797 = vmatpush1.msra.mxu0 0.0
    %1798 = vmatprep.subr.mxu0 0.0
    %1799 = vmatpush1.msra.mxu0 0.0
    %1800 = vmatprep.subr.mxu0 0.0
    %1801 = vmatpush1.msra.mxu0 0.0
    %1802 = vmatprep.subr.mxu0 0.0
    %1803 = vmatpush1.msra.mxu0 0.0
    %1804 = vmatprep.subr.mxu0 0.0
    %1805 = vmatpush1.msra.mxu0 0.0
    %1806 = vmatprep.subr.mxu0 0.0
    %1807 = vmatpush1.msra.mxu0 0.0
    %1808 = vmatprep.subr.mxu0 0.0
    %1809 = vmatpush1.msra.mxu0 0.0
    %1810 = vmatprep.subr.mxu0 0.0
    %1811 = vmatpush1.msra.mxu0 0.0
    %1812 = vmatprep.subr.mxu0 0.0
    %1813 = vmatpush1.msra.mxu0 0.0
    %1814 = vmatprep.subr.mxu0 0.0
    %1815 = vmatpush1.msra.mxu0 0.0
    %1816 = vmatprep.subr.mxu0 0.0
    %1817 = vmatpush1.msra.mxu0 0.0
    %1818 = vmatprep.subr.mxu0 0.0
    %1819 = vmatpush1.msra.mxu0 0.0
    %1820 = vmatprep.subr.mxu0 0.0
    %1821 = vmatpush1.msra.mxu0 0.0
    %1822 = vmatprep.subr.mxu0 0.0
    %1823 = vmatpush1.msra.mxu0 0.0
    %1824 = vmatprep.subr.mxu0 0.0
    %1825 = vmatpush1.msra.mxu0 0.0
    %1826 = vmatprep.mubr.f32.mxu0 0.0
    %1827 = vmatmul.mubr.f32.gmra.mrb[0].mxu0 %v1757
    %v1828 = vpop.f32.mrb[0].mxu0
    %v1829 = vadd.f32 %v1754, %v1828
    %v1830 = vpop.f32.mrb[0].mxu0
    %1831 = vmatprep.mubr.f32.mxu0 0.0
    %1832 = vmatmul.mubr.f32.gmra.mrb[0].mxu0 %v1760
    %v1833 = vpop.f32.mrb[0].mxu0
    %v1834 = vadd.f32 %v1754, %v1833
    %v1835 = vpop.f32.mrb[0].mxu0
    %1836 = vdwg.mxu0
    %v1837 = vadd.f32 %v1213, %v1829
    %v1838 = vadd.f32 %v1214, %v1834
    %v1839 = vld [vmem:[%s45] sm:$0x1]
    %v1840 = vld [vmem:[%s47] sm:$0x1]
    %v1841 = vsel %vm239, %v1837, 0.0
    %1842 = vadd.xlane.f32.xlu0 %v1841
    %v1843 = vpop.xlane.xlu0 %1842
    %v1844 = vsel %vm239, %v1838, 0.0
    %1845 = vadd.xlane.f32.xlu0 %v1844
    %v1846 = vpop.xlane.xlu0 %1845
    %v1847 = vmul.f32 %v1843, %v246
    %v1848 = vmul.f32 %v1846, %v246
    %v1849 = vsub.f32 %v1837, %v1847
    %v1850 = vsub.f32 %v1838, %v1848
    %v1851 = vmul.f32 %v1849, %v1849
    %v1852 = vmul.f32 %v1850, %v1850
    %v1853 = vsel %vm239, %v1851, 0.0
    %1854 = vadd.xlane.f32.xlu0 %v1853
    %v1855 = vpop.xlane.xlu0 %1854
    %v1856 = vsel %vm239, %v1852, 0.0
    %1857 = vadd.xlane.f32.xlu0 %v1856
    %v1858 = vpop.xlane.xlu0 %1857
    %v1859 = vmul.f32 %v1855, %v246
    %v1860 = vmul.f32 %v1858, %v246
    %v1861 = vadd.f32 %v1859, 1e-12
    %v1862 = vadd.f32 %v1860, 1e-12
    %v1863 = vrsqrt.pop %v1861
    %v1864 = vrsqrt.pop %v1862
    %v1865 = vmul.f32 %v1849, %v1863
    %v1866 = vmul.f32 %v1850, %v1864
    %v1868 = vlaneseq
    %v1869 = vshrl.u32 %v1868, 7
    %v1870 = vsub.s32 0, %v1869
    %v1871 = vrot.slane %v1839, %v1870
    %v1873 = vmul.f32 %v1865, %v1871
    %v1874 = vmul.f32 %v1866, %v1871
    %v1876 = vlaneseq
    %v1877 = vshrl.u32 %v1876, 7
    %v1878 = vsub.s32 0, %v1877
    %v1879 = vrot.slane %v1840, %v1878
    %v1881 = vadd.f32 %v1873, %v1879
    %v1882 = vadd.f32 %v1874, %v1879
    %v1883 = vld [vmem:[%s49] sm:$0xff]
    %v1884 = vld [vmem:[%s49 + $0x8] sm:$0xff]
    %v1885 = vld [vmem:[%s49 + $0x10] sm:$0xff]
    %v1886 = vld [vmem:[%s49 + $0x18] sm:$0xff]
    %v1887 = vld [vmem:[%s51] sm:$0x1]
    %v1889 = vlaneseq
    %v1890 = vshrl.u32 %v1889, 7
    %v1891 = vsub.s32 0, %v1890
    %v1892 = vrot.slane %v1887, %v1891
    %v1895 = vsel %vm239, %v1881, 0
    %v1898 = vsel %vm239, %v1882, 0
    %1900 = vmatprep.subr.mxu0 0.0
    %1901 = vmatpush1.msra.mxu0 %v1883
    %1902 = vmatprep.subr.mxu0 0.0
    %1903 = vmatpush1.msra.mxu0 %v1884
    %1904 = vmatprep.subr.mxu0 0.0
    %1905 = vmatpush1.msra.mxu0 %v1885
    %1906 = vmatprep.subr.mxu0 0.0
    %1907 = vmatpush1.msra.mxu0 %v1886
    %1908 = vmatprep.subr.mxu0 0.0
    %1909 = vmatpush1.msra.mxu0 0.0
    %1910 = vmatprep.subr.mxu0 0.0
    %1911 = vmatpush1.msra.mxu0 0.0
    %1912 = vmatprep.subr.mxu0 0.0
    %1913 = vmatpush1.msra.mxu0 0.0
    %1914 = vmatprep.subr.mxu0 0.0
    %1915 = vmatpush1.msra.mxu0 0.0
    %1916 = vmatprep.subr.mxu0 0.0
    %1917 = vmatpush1.msra.mxu0 0.0
    %1918 = vmatprep.subr.mxu0 0.0
    %1919 = vmatpush1.msra.mxu0 0.0
    %1920 = vmatprep.subr.mxu0 0.0
    %1921 = vmatpush1.msra.mxu0 0.0
    %1922 = vmatprep.subr.mxu0 0.0
    %1923 = vmatpush1.msra.mxu0 0.0
    %1924 = vmatprep.subr.mxu0 0.0
    %1925 = vmatpush1.msra.mxu0 0.0
    %1926 = vmatprep.subr.mxu0 0.0
    %1927 = vmatpush1.msra.mxu0 0.0
    %1928 = vmatprep.subr.mxu0 0.0
    %1929 = vmatpush1.msra.mxu0 0.0
    %1930 = vmatprep.subr.mxu0 0.0
    %1931 = vmatpush1.msra.mxu0 0.0
    %1932 = vmatprep.subr.mxu0 0.0
    %1933 = vmatpush1.msra.mxu0 0.0
    %1934 = vmatprep.subr.mxu0 0.0
    %1935 = vmatpush1.msra.mxu0 0.0
    %1936 = vmatprep.subr.mxu0 0.0
    %1937 = vmatpush1.msra.mxu0 0.0
    %1938 = vmatprep.subr.mxu0 0.0
    %1939 = vmatpush1.msra.mxu0 0.0
    %1940 = vmatprep.subr.mxu0 0.0
    %1941 = vmatpush1.msra.mxu0 0.0
    %1942 = vmatprep.subr.mxu0 0.0
    %1943 = vmatpush1.msra.mxu0 0.0
    %1944 = vmatprep.subr.mxu0 0.0
    %1945 = vmatpush1.msra.mxu0 0.0
    %1946 = vmatprep.subr.mxu0 0.0
    %1947 = vmatpush1.msra.mxu0 0.0
    %1948 = vmatprep.subr.mxu0 0.0
    %1949 = vmatpush1.msra.mxu0 0.0
    %1950 = vmatprep.subr.mxu0 0.0
    %1951 = vmatpush1.msra.mxu0 0.0
    %1952 = vmatprep.subr.mxu0 0.0
    %1953 = vmatpush1.msra.mxu0 0.0
    %1954 = vmatprep.subr.mxu0 0.0
    %1955 = vmatpush1.msra.mxu0 0.0
    %1956 = vmatprep.subr.mxu0 0.0
    %1957 = vmatpush1.msra.mxu0 0.0
    %1958 = vmatprep.subr.mxu0 0.0
    %1959 = vmatpush1.msra.mxu0 0.0
    %1960 = vmatprep.subr.mxu0 0.0
    %1961 = vmatpush1.msra.mxu0 0.0
    %1962 = vmatprep.subr.mxu0 0.0
    %1963 = vmatpush1.msra.mxu0 0.0
    %1964 = vmatprep.mubr.f32.mxu0 0.0
    %1965 = vmatmul.mubr.f32.gmra.mrb[0].mxu0 %v1895
    %v1966 = vpop.f32.mrb[0].mxu0
    %v1967 = vadd.f32 %v1892, %v1966
    %v1968 = vpop.f32.mrb[0].mxu0
    %1969 = vmatprep.mubr.f32.mxu0 0.0
    %1970 = vmatmul.mubr.f32.gmra.mrb[0].mxu0 %v1898
    %v1971 = vpop.f32.mrb[0].mxu0
    %v1972 = vadd.f32 %v1892, %v1971
    %v1973 = vpop.f32.mrb[0].mxu0
    %1974 = vdwg.mxu0
    %v1975 = vmul.f32 %v1967, 0.5
    %v1976 = vmul.f32 %v1972, 0.5
    %v1977 = vmul.f32 %v1967, 0.044715
    %v1978 = vmul.f32 %v1972, 0.044715
    %v1979 = vmul.f32 %v1977, %v1967
    %v1980 = vmul.f32 %v1978, %v1972
    %v1981 = vmul.f32 %v1979, %v1967
    %v1982 = vmul.f32 %v1980, %v1972
    %v1983 = vadd.f32 %v1967, %v1981
    %v1984 = vadd.f32 %v1972, %v1982
    %v1985 = vmul.f32 %v1983, 0.7978846
    %v1986 = vmul.f32 %v1984, 0.7978846
    %v1987 = vtanh.pop %v1985
    %v1988 = vtanh.pop %v1986
    %v1989 = vadd.f32 %v1987, 1.0
    %v1990 = vadd.f32 %v1988, 1.0
    %v1991 = vmul.f32 %v1975, %v1989
    %v1992 = vmul.f32 %v1976, %v1990
    %v1993 = vld [vmem:[%s53] sm:$0xff]
    %v1994 = vld [vmem:[%s53 + $0x8] sm:$0xff]
    %v1995 = vld [vmem:[%s53 + $0x10] sm:$0xff]
    %v1996 = vld [vmem:[%s53 + $0x18] sm:$0xff]
    %v1997 = vld [vmem:[%s53 + $0x20] sm:$0xff]
    %v1998 = vld [vmem:[%s53 + $0x28] sm:$0xff]
    %v1999 = vld [vmem:[%s53 + $0x30] sm:$0xff]
    %v2000 = vld [vmem:[%s53 + $0x38] sm:$0xff]
    %v2001 = vld [vmem:[%s55] sm:$0x1]
    %v2003 = vlaneseq
    %v2004 = vshrl.u32 %v2003, 7
    %v2005 = vsub.s32 0, %v2004
    %v2006 = vrot.slane %v2001, %v2005
    %v2009 = vsel %vm551, %v1991, 0
    %v2012 = vsel %vm551, %v1992, 0
    %2014 = vmatprep.subr.mxu0 0.0
    %2015 = vmatpush1.msra.mxu0 %v1993
    %2016 = vmatprep.subr.mxu0 0.0
    %2017 = vmatpush1.msra.mxu0 %v1994
    %2018 = vmatprep.subr.mxu0 0.0
    %2019 = vmatpush1.msra.mxu0 %v1995
    %2020 = vmatprep.subr.mxu0 0.0
    %2021 = vmatpush1.msra.mxu0 %v1996
    %2022 = vmatprep.subr.mxu0 0.0
    %2023 = vmatpush1.msra.mxu0 %v1997
    %2024 = vmatprep.subr.mxu0 0.0
    %2025 = vmatpush1.msra.mxu0 %v1998
    %2026 = vmatprep.subr.mxu0 0.0
    %2027 = vmatpush1.msra.mxu0 %v1999
    %2028 = vmatprep.subr.mxu0 0.0
    %2029 = vmatpush1.msra.mxu0 %v2000
    %2030 = vmatprep.subr.mxu0 0.0
    %2031 = vmatpush1.msra.mxu0 0.0
    %2032 = vmatprep.subr.mxu0 0.0
    %2033 = vmatpush1.msra.mxu0 0.0
    %2034 = vmatprep.subr.mxu0 0.0
    %2035 = vmatpush1.msra.mxu0 0.0
    %2036 = vmatprep.subr.mxu0 0.0
    %2037 = vmatpush1.msra.mxu0 0.0
    %2038 = vmatprep.subr.mxu0 0.0
    %2039 = vmatpush1.msra.mxu0 0.0
    %2040 = vmatprep.subr.mxu0 0.0
    %2041 = vmatpush1.msra.mxu0 0.0
    %2042 = vmatprep.subr.mxu0 0.0
    %2043 = vmatpush1.msra.mxu0 0.0
    %2044 = vmatprep.subr.mxu0 0.0
    %2045 = vmatpush1.msra.mxu0 0.0
    %2046 = vmatprep.subr.mxu0 0.0
    %2047 = vmatpush1.msra.mxu0 0.0
    %2048 = vmatprep.subr.mxu0 0.0
    %2049 = vmatpush1.msra.mxu0 0.0
    %2050 = vmatprep.subr.mxu0 0.0
    %2051 = vmatpush1.msra.mxu0 0.0
    %2052 = vmatprep.subr.mxu0 0.0
    %2053 = vmatpush1.msra.mxu0 0.0
    %2054 = vmatprep.subr.mxu0 0.0
    %2055 = vmatpush1.msra.mxu0 0.0
    %2056 = vmatprep.subr.mxu0 0.0
    %2057 = vmatpush1.msra.mxu0 0.0
    %2058 = vmatprep.subr.mxu0 0.0
    %2059 = vmatpush1.msra.mxu0 0.0
    %2060 = vmatprep.subr.mxu0 0.0
    %2061 = vmatpush1.msra.mxu0 0.0
    %2062 = vmatprep.subr.mxu0 0.0
    %2063 = vmatpush1.msra.mxu0 0.0
    %2064 = vmatprep.subr.mxu0 0.0
    %2065 = vmatpush1.msra.mxu0 0.0
    %2066 = vmatprep.subr.mxu0 0.0
    %2067 = vmatpush1.msra.mxu0 0.0
    %2068 = vmatprep.subr.mxu0 0.0
    %2069 = vmatpush1.msra.mxu0 0.0
    %2070 = vmatprep.subr.mxu0 0.0
    %2071 = vmatpush1.msra.mxu0 0.0
    %2072 = vmatprep.subr.mxu0 0.0
    %2073 = vmatpush1.msra.mxu0 0.0
    %2074 = vmatprep.subr.mxu0 0.0
    %2075 = vmatpush1.msra.mxu0 0.0
    %2076 = vmatprep.subr.mxu0 0.0
    %2077 = vmatpush1.msra.mxu0 0.0
    %2078 = vmatprep.mubr.f32.mxu0 0.0
    %2079 = vmatmul.mubr.f32.gmra.mrb[0].mxu0 %v2009
    %v2080 = vpop.f32.mrb[0].mxu0
    %v2081 = vadd.f32 %v2006, %v2080
    %v2082 = vpop.f32.mrb[0].mxu0
    %2083 = vmatprep.mubr.f32.mxu0 0.0
    %2084 = vmatmul.mubr.f32.gmra.mrb[0].mxu0 %v2012
    %v2085 = vpop.f32.mrb[0].mxu0
    %v2086 = vadd.f32 %v2006, %v2085
    %v2087 = vpop.f32.mrb[0].mxu0
    %2088 = vdwg.mxu0
    %v2089 = vadd.f32 %v1881, %v2081
    %v2090 = vadd.f32 %v1882, %v2086
    %v2091 = vld [vmem:[%s57] sm:$0x1]
    %v2092 = vld [vmem:[%s59] sm:$0x1]
    %v2093 = vsel %vm239, %v2089, 0.0
    %2094 = vadd.xlane.f32.xlu0 %v2093
    %v2095 = vpop.xlane.xlu0 %2094
    %v2096 = vsel %vm239, %v2090, 0.0
    %2097 = vadd.xlane.f32.xlu0 %v2096
    %v2098 = vpop.xlane.xlu0 %2097
    %v2099 = vmul.f32 %v2095, %v246
    %v2100 = vmul.f32 %v2098, %v246
    %v2101 = vsub.f32 %v2089, %v2099
    %v2102 = vsub.f32 %v2090, %v2100
    %v2103 = vmul.f32 %v2101, %v2101
    %v2104 = vmul.f32 %v2102, %v2102
    %v2105 = vsel %vm239, %v2103, 0.0
    %2106 = vadd.xlane.f32.xlu0 %v2105
    %v2107 = vpop.xlane.xlu0 %2106
    %v2108 = vsel %vm239, %v2104, 0.0
    %2109 = vadd.xlane.f32.xlu0 %v2108
    %v2110 = vpop.xlane.xlu0 %2109
    %v2111 = vmul.f32 %v2107, %v246
    %v2112 = vmul.f32 %v2110, %v246
    %v2113 = vadd.f32 %v2111, 1e-12
    %v2114 = vadd.f32 %v2112, 1e-12
    %v2115 = vrsqrt.pop %v2113
    %v2116 = vrsqrt.pop %v2114
    %v2117 = vmul.f32 %v2101, %v2115
    %v2118 = vmul.f32 %v2102, %v2116
    %v2120 = vlaneseq
    %v2121 = vshrl.u32 %v2120, 7
    %v2122 = vsub.s32 0, %v2121
    %v2123 = vrot.slane %v2091, %v2122
    %v2125 = vmul.f32 %v2117, %v2123
    %v2126 = vmul.f32 %v2118, %v2123
    %v2128 = vlaneseq
    %v2129 = vshrl.u32 %v2128, 7
    %v2130 = vsub.s32 0, %v2129
    %v2131 = vrot.slane %v2092, %v2130
    %v2133 = vadd.f32 %v2125, %v2131
    %v2134 = vadd.f32 %v2126, %v2131
    %v2135 = vld [vmem:[%s11] sm:$0x3]
    %v2137 = vsel %vm819, %v2135, 0
    %2139 = vmatprep.subr.mxu0 0.0
    %2140 = vmatpush1.msra.mxu0 %v2133
    %2141 = vmatprep.subr.mxu0 0.0
    %2142 = vmatpush1.msra.mxu0 %v2134
    %2143 = vmatprep.subr.mxu0 0.0
    %2144 = vmatpush1.msra.mxu0 0.0
    %2145 = vmatprep.subr.mxu0 0.0
    %2146 = vmatpush1.msra.mxu0 0.0
    %2147 = vmatprep.subr.mxu0 0.0
    %2148 = vmatpush1.msra.mxu0 0.0
    %2149 = vmatprep.subr.mxu0 0.0
    %2150 = vmatpush1.msra.mxu0 0.0
    %2151 = vmatprep.subr.mxu0 0.0
    %2152 = vmatpush1.msra.mxu0 0.0
    %2153 = vmatprep.subr.mxu0 0.0
    %2154 = vmatpush1.msra.mxu0 0.0
    %2155 = vmatprep.subr.mxu0 0.0
    %2156 = vmatpush1.msra.mxu0 0.0
    %2157 = vmatprep.subr.mxu0 0.0
    %2158 = vmatpush1.msra.mxu0 0.0
    %2159 = vmatprep.subr.mxu0 0.0
    %2160 = vmatpush1.msra.mxu0 0.0
    %2161 = vmatprep.subr.mxu0 0.0
    %2162 = vmatpush1.msra.mxu0 0.0
    %2163 = vmatprep.subr.mxu0 0.0
    %2164 = vmatpush1.msra.mxu0 0.0
    %2165 = vmatprep.subr.mxu0 0.0
    %2166 = vmatpush1.msra.mxu0 0.0
    %2167 = vmatprep.subr.mxu0 0.0
    %2168 = vmatpush1.msra.mxu0 0.0
    %2169 = vmatprep.subr.mxu0 0.0
    %2170 = vmatpush1.msra.mxu0 0.0
    %2171 = vmatprep.subr.mxu0 0.0
    %2172 = vmatpush1.msra.mxu0 0.0
    %2173 = vmatprep.subr.mxu0 0.0
    %2174 = vmatpush1.msra.mxu0 0.0
    %2175 = vmatprep.subr.mxu0 0.0
    %2176 = vmatpush1.msra.mxu0 0.0
    %2177 = vmatprep.subr.mxu0 0.0
    %2178 = vmatpush1.msra.mxu0 0.0
    %2179 = vmatprep.subr.mxu0 0.0
    %2180 = vmatpush1.msra.mxu0 0.0
    %2181 = vmatprep.subr.mxu0 0.0
    %2182 = vmatpush1.msra.mxu0 0.0
    %2183 = vmatprep.subr.mxu0 0.0
    %2184 = vmatpush1.msra.mxu0 0.0
    %2185 = vmatprep.subr.mxu0 0.0
    %2186 = vmatpush1.msra.mxu0 0.0
    %2187 = vmatprep.subr.mxu0 0.0
    %2188 = vmatpush1.msra.mxu0 0.0
    %2189 = vmatprep.subr.mxu0 0.0
    %2190 = vmatpush1.msra.mxu0 0.0
    %2191 = vmatprep.subr.mxu0 0.0
    %2192 = vmatpush1.msra.mxu0 0.0
    %2193 = vmatprep.subr.mxu0 0.0
    %2194 = vmatpush1.msra.mxu0 0.0
    %2195 = vmatprep.subr.mxu0 0.0
    %2196 = vmatpush1.msra.mxu0 0.0
    %2197 = vmatprep.subr.mxu0 0.0
    %2198 = vmatpush1.msra.mxu0 0.0
    %2199 = vmatprep.subr.mxu0 0.0
    %2200 = vmatpush1.msra.mxu0 0.0
    %2201 = vmatprep.subr.mxu0 0.0
    %2202 = vmatpush1.msra.mxu0 0.0
    %2203 = vmatprep.mubr.f32.mxu0 0.0
    %2204 = vmatmul.mubr.f32.gmra.mrb[0].mxu0 %v2137
    %v2205 = vpop.f32.mrb[0].mxu0
    %v2206 = vadd.f32 0.0, %v2205
    %v2207 = vpop.f32.mrb[0].mxu0
    %2208 = vdwg.mxu0
    %v2209 = vld [vmem:[%s61] sm:$0xff]
    %v2210 = vld [vmem:[%s61 + $0x8] sm:$0xff]
    %v2211 = vld [vmem:[%s61 + $0x10] sm:$0xff]
    %v2212 = vld [vmem:[%s61 + $0x18] sm:$0xff]
    %v2213 = vld [vmem:[%s63] sm:$0x1]
    %v2215 = vlaneseq
    %v2216 = vshrl.u32 %v2215, 7
    %v2217 = vsub.s32 0, %v2216
    %v2218 = vrot.slane %v2213, %v2217
    %v2221 = vsel %vm239, %v2206, 0
    %2223 = vmatprep.subr.mxu0 0.0
    %2224 = vmatpush1.msra.mxu0 %v2209
    %2225 = vmatprep.subr.mxu0 0.0
    %2226 = vmatpush1.msra.mxu0 %v2210
    %2227 = vmatprep.subr.mxu0 0.0
    %2228 = vmatpush1.msra.mxu0 %v2211
    %2229 = vmatprep.subr.mxu0 0.0
    %2230 = vmatpush1.msra.mxu0 %v2212
    %2231 = vmatprep.subr.mxu0 0.0
    %2232 = vmatpush1.msra.mxu0 0.0
    %2233 = vmatprep.subr.mxu0 0.0
    %2234 = vmatpush1.msra.mxu0 0.0
    %2235 = vmatprep.subr.mxu0 0.0
    %2236 = vmatpush1.msra.mxu0 0.0
    %2237 = vmatprep.subr.mxu0 0.0
    %2238 = vmatpush1.msra.mxu0 0.0
    %2239 = vmatprep.subr.mxu0 0.0
    %2240 = vmatpush1.msra.mxu0 0.0
    %2241 = vmatprep.subr.mxu0 0.0
    %2242 = vmatpush1.msra.mxu0 0.0
    %2243 = vmatprep.subr.mxu0 0.0
    %2244 = vmatpush1.msra.mxu0 0.0
    %2245 = vmatprep.subr.mxu0 0.0
    %2246 = vmatpush1.msra.mxu0 0.0
    %2247 = vmatprep.subr.mxu0 0.0
    %2248 = vmatpush1.msra.mxu0 0.0
    %2249 = vmatprep.subr.mxu0 0.0
    %2250 = vmatpush1.msra.mxu0 0.0
    %2251 = vmatprep.subr.mxu0 0.0
    %2252 = vmatpush1.msra.mxu0 0.0
    %2253 = vmatprep.subr.mxu0 0.0
    %2254 = vmatpush1.msra.mxu0 0.0
    %2255 = vmatprep.subr.mxu0 0.0
    %2256 = vmatpush1.msra.mxu0 0.0
    %2257 = vmatprep.subr.mxu0 0.0
    %2258 = vmatpush1.msra.mxu0 0.0
    %2259 = vmatprep.subr.mxu0 0.0
    %2260 = vmatpush1.msra.mxu0 0.0
    %2261 = vmatprep.subr.mxu0 0.0
    %2262 = vmatpush1.msra.mxu0 0.0
    %2263 = vmatprep.subr.mxu0 0.0
    %2264 = vmatpush1.msra.mxu0 0.0
    %2265 = vmatprep.subr.mxu0 0.0
    %2266 = vmatpush1.msra.mxu0 0.0
    %2267 = vmatprep.subr.mxu0 0.0
    %2268 = vmatpush1.msra.mxu0 0.0
    %2269 = vmatprep.subr.mxu0 0.0
    %2270 = vmatpush1.msra.mxu0 0.0
    %2271 = vmatprep.subr.mxu0 0.0
    %2272 = vmatpush1.msra.mxu0 0.0
    %2273 = vmatprep.subr.mxu0 0.0
    %2274 = vmatpush1.msra.mxu0 0.0
    %2275 = vmatprep.subr.mxu0 0.0
    %2276 = vmatpush1.msra.mxu0 0.0
    %2277 = vmatprep.subr.mxu0 0.0
    %2278 = vmatpush1.msra.mxu0 0.0
    %2279 = vmatprep.subr.mxu0 0.0
    %2280 = vmatpush1.msra.mxu0 0.0
    %2281 = vmatprep.subr.mxu0 0.0
    %2282 = vmatpush1.msra.mxu0 0.0
    %2283 = vmatprep.subr.mxu0 0.0
    %2284 = vmatpush1.msra.mxu0 0.0
    %2285 = vmatprep.subr.mxu0 0.0
    %2286 = vmatpush1.msra.mxu0 0.0
    %2287 = vmatprep.mubr.f32.mxu0 0.0
    %2288 = vmatmul.mubr.f32.gmra.mrb[0].mxu0 %v2221
    %v2289 = vpop.f32.mrb[0].mxu0
    %v2290 = vadd.f32 %v2218, %v2289
    %v2291 = vpop.f32.mrb[0].mxu0
    %2292 = vdwg.mxu0
    %v2293 = vmax.f32 %v2290, 0.0
    %v2294 = vld [vmem:[%s65] sm:$0xff]
    %v2295 = vld [vmem:[%s65 + $0x8] sm:$0xff]
    %v2296 = vld [vmem:[%s65 + $0x10] sm:$0xff]
    %v2297 = vld [vmem:[%s65 + $0x18] sm:$0xff]
    %v2298 = vld [vmem:[%s67] sm:$0x1]
    %v2300 = vlaneseq
    %v2301 = vshrl.u32 %v2300, 7
    %v2302 = vsub.s32 0, %v2301
    %v2303 = vrot.slane %v2298, %v2302
    %v2306 = vsel %vm239, %v2293, 0
    %2308 = vmatprep.subr.mxu0 0.0
    %2309 = vmatpush1.msra.mxu0 %v2294
    %2310 = vmatprep.subr.mxu0 0.0
    %2311 = vmatpush1.msra.mxu0 %v2295
    %2312 = vmatprep.subr.mxu0 0.0
    %2313 = vmatpush1.msra.mxu0 %v2296
    %2314 = vmatprep.subr.mxu0 0.0
    %2315 = vmatpush1.msra.mxu0 %v2297
    %2316 = vmatprep.subr.mxu0 0.0
    %2317 = vmatpush1.msra.mxu0 0.0
    %2318 = vmatprep.subr.mxu0 0.0
    %2319 = vmatpush1.msra.mxu0 0.0
    %2320 = vmatprep.subr.mxu0 0.0
    %2321 = vmatpush1.msra.mxu0 0.0
    %2322 = vmatprep.subr.mxu0 0.0
    %2323 = vmatpush1.msra.mxu0 0.0
    %2324 = vmatprep.subr.mxu0 0.0
    %2325 = vmatpush1.msra.mxu0 0.0
    %2326 = vmatprep.subr.mxu0 0.0
    %2327 = vmatpush1.msra.mxu0 0.0
    %2328 = vmatprep.subr.mxu0 0.0
    %2329 = vmatpush1.msra.mxu0 0.0
    %2330 = vmatprep.subr.mxu0 0.0
    %2331 = vmatpush1.msra.mxu0 0.0
    %2332 = vmatprep.subr.mxu0 0.0
    %2333 = vmatpush1.msra.mxu0 0.0
    %2334 = vmatprep.subr.mxu0 0.0
    %2335 = vmatpush1.msra.mxu0 0.0
    %2336 = vmatprep.subr.mxu0 0.0
    %2337 = vmatpush1.msra.mxu0 0.0
    %2338 = vmatprep.subr.mxu0 0.0
    %2339 = vmatpush1.msra.mxu0 0.0
    %2340 = vmatprep.subr.mxu0 0.0
    %2341 = vmatpush1.msra.mxu0 0.0
    %2342 = vmatprep.subr.mxu0 0.0
    %2343 = vmatpush1.msra.mxu0 0.0
    %2344 = vmatprep.subr.mxu0 0.0
    %2345 = vmatpush1.msra.mxu0 0.0
    %2346 = vmatprep.subr.mxu0 0.0
    %2347 = vmatpush1.msra.mxu0 0.0
    %2348 = vmatprep.subr.mxu0 0.0
    %2349 = vmatpush1.msra.mxu0 0.0
    %2350 = vmatprep.subr.mxu0 0.0
    %2351 = vmatpush1.msra.mxu0 0.0
    %2352 = vmatprep.subr.mxu0 0.0
    %2353 = vmatpush1.msra.mxu0 0.0
    %2354 = vmatprep.subr.mxu0 0.0
    %2355 = vmatpush1.msra.mxu0 0.0
    %2356 = vmatprep.subr.mxu0 0.0
    %2357 = vmatpush1.msra.mxu0 0.0
    %2358 = vmatprep.subr.mxu0 0.0
    %2359 = vmatpush1.msra.mxu0 0.0
    %2360 = vmatprep.subr.mxu0 0.0
    %2361 = vmatpush1.msra.mxu0 0.0
    %2362 = vmatprep.subr.mxu0 0.0
    %2363 = vmatpush1.msra.mxu0 0.0
    %2364 = vmatprep.subr.mxu0 0.0
    %2365 = vmatpush1.msra.mxu0 0.0
    %2366 = vmatprep.subr.mxu0 0.0
    %2367 = vmatpush1.msra.mxu0 0.0
    %2368 = vmatprep.subr.mxu0 0.0
    %2369 = vmatpush1.msra.mxu0 0.0
    %2370 = vmatprep.subr.mxu0 0.0
    %2371 = vmatpush1.msra.mxu0 0.0
    %2372 = vmatprep.mubr.f32.mxu0 0.0
    %2373 = vmatmul.mubr.f32.gmra.mrb[0].mxu0 %v2306
    %v2374 = vpop.f32.mrb[0].mxu0
    %v2375 = vadd.f32 %v2303, %v2374
    %v2376 = vpop.f32.mrb[0].mxu0
    %2377 = vdwg.mxu0
    %vm2378 = vcmask 9216
    %2379 = vst.msk [vmem:[#allocation2] sm:$0x3] %vm2378, %v2375
    // Predicated region
    $region138: #{bert_pallas_forward.1} parent=1 // pred_check
      _
    $region139: #{bert_pallas_forward.1} parent=1 // pred_check_branch
      %2381 = sbr.rel (0) target = $region141
    $region140: #{bert_pallas_forward.1} parent=1 // pred_region
      %s2383 = ssub.s32 32, 32
      %2384 = vsyncadd [#allocation3], %s2383
      %s2386 = sshll.u32 [#allocation2], 4
      %s2387 = int_to_ptr.vmem [resolvable:$true] %s2386
      %2389 = dma.vmem_to_hbm [thread:$0]  %s2387, 32, %s69, [#allocation3]
    $region141: #{bert_pallas_forward.1} parent=1 // pred_fallthru
      _
    // Predicated region
    $region142: #{bert_pallas_forward.1} parent=1 // pred_check
      _
    $region143: #{bert_pallas_forward.1} parent=1 // pred_check_branch
      %2391 = sbr.rel (0) target = $region145
    $region144: #{bert_pallas_forward.1} parent=1 // pred_region
      %2392 = dma.done [#allocation3], 32
    $region145: #{bert_pallas_forward.1} parent=1 // pred_fallthru
      _
    %2393 = vsyncpa [#allocation3], 1

</llo_original>
